<compile_context>
chip_gen: v5e
topology: v5e:2x2
jax: 0.10.0
libtpu: 0.0.40
codegen_flags: <defaults>
</compile_context>

<pallas_src>
import functools

import numpy as np

import jax
import jax.numpy as jnp
from jax.experimental import pallas as pl
from jax.experimental.pallas import tpu as pltpu

BN_EPS = 1e-5


# ------------------------------ Pallas kernel ------------------------------ #

def _backbone_kernel(x_ref, w_stem_ref, b_stem_ref, w1_ref, b1_ref,
                     w2_ref, b2_ref, wsc_ref, bsc_ref, o_ref,
                     *, n_blocks, sc_idx, l_keep):
    """Fused stem + 7 BasicBlocks for one batch element's tokens.

    x_ref:      (L, Cin)       tokens, stride-surviving positions first
    w_stem_ref: (Cin, C)       BN-folded stem weight,  b_stem_ref: (1, C)
    w1_ref/w2_ref: (7, C, C)   BN-folded block weights
    b1_ref/b2_ref: (7, 1, C)   BN-folded block shifts
    wsc_ref:    (C, C)         BN-folded shortcut conv (strided block only)
    o_ref:      (L_out, C)
    """
    f32 = jnp.float32

    # Stem: relu(bn(conv(x)))
    h = jnp.maximum(
        jnp.dot(x_ref[...], w_stem_ref[...], preferred_element_type=f32)
        + b_stem_ref[...], 0.0)

    # BasicBlocks (statically unrolled; all weights stay resident in VMEM).
    for i in range(n_blocks):
        if i == sc_idx:
            # Strided block: the stride-s subsample is a contiguous leading
            # slice thanks to the wrapper-side token reorder.
            xin = h[:l_keep, :]
            sc = jnp.dot(xin, wsc_ref[...], preferred_element_type=f32) + bsc_ref[...]
        else:
            xin = h
            sc = h
        t = jnp.maximum(
            jnp.dot(xin, w1_ref[i], preferred_element_type=f32) + b1_ref[i], 0.0)
        h = jnp.maximum(
            jnp.dot(t, w2_ref[i], preferred_element_type=f32) + b2_ref[i] + sc, 0.0)

    o_ref[...] = h.astype(o_ref.dtype)


def backbone_forward_pallas(x_ncl, params):
    n, cin, length = x_ncl.shape
    stride = params["stride"]
    sc_idx = params["sc_idx"]
    n_blocks = params["w1"].shape[0]
    c = params["w_stem"].shape[1]
    l_keep = -(-length // stride)  # ceil(L / stride)

    # Sublane constraint on per-batch token blocks (trivially satisfied here).
    assert n == 1 or (length % 8 == 0 and l_keep % 8 == 0), (n, length, l_keep)

    # Token reorder: per batch element, put positions with l % stride == 0
    # first, so the in-kernel strided subsample is a contiguous slice.
    x_nlc = jnp.transpose(x_ncl, (0, 2, 1)).astype(jnp.float32)  # (N, L, Cin)
    if stride != 1:
        keep = np.arange(0, length, stride, dtype=np.int32)
        drop = np.array([l for l in range(length) if l % stride != 0],
                        dtype=np.int32)
        perm = np.concatenate([keep, drop])
        x_nlc = x_nlc[:, perm, :]
    x_tok = x_nlc.reshape(n * length, cin)

    kernel = functools.partial(_backbone_kernel, n_blocks=n_blocks,
                               sc_idx=sc_idx, l_keep=l_keep)

    const2 = lambda i: (0, 0)
    const3 = lambda i: (0, 0, 0)

    out = pl.pallas_call(
        kernel,
        out_shape=jax.ShapeDtypeStruct((n * l_keep, c), jnp.float32),
        grid=(n,),
        in_specs=[
            pl.BlockSpec((length, cin), lambda i: (i, 0)),        # tokens
            pl.BlockSpec(params["w_stem"].shape, const2),
            pl.BlockSpec(params["b_stem"].shape, const2),
            pl.BlockSpec(params["w1"].shape, const3),
            pl.BlockSpec(params["b1"].shape, const3),
            pl.BlockSpec(params["w2"].shape, const3),
            pl.BlockSpec(params["b2"].shape, const3),
            pl.BlockSpec(params["w_sc"].shape, const2),
            pl.BlockSpec(params["b_sc"].shape, const2),
        ],
        out_specs=pl.BlockSpec((l_keep, c), lambda i: (i, 0)),
        compiler_params=pltpu.CompilerParams(
            dimension_semantics=("parallel",)),
    )(x_tok, params["w_stem"], params["b_stem"],
      params["w1"], params["b1"], params["w2"], params["b2"],
      params["w_sc"], params["b_sc"])

    # (N*L_out, C) -> (N, C, L_out)
    return jnp.transpose(out.reshape(n, l_keep, c), (0, 2, 1))


# ------------------------------ parameters --------------------------------- #

def _fold_bn(key, ch):
    """Eval-mode BatchNorm1d folded into per-channel scale/shift."""
    k1, k2, k3, k4 = jax.random.split(key, 4)
    gamma = 1.0 + 0.1 * jax.random.normal(k1, (ch,), jnp.float32)
    beta = 0.1 * jax.random.normal(k2, (ch,), jnp.float32)
    mean = 0.1 * jax.random.normal(k3, (ch,), jnp.float32)
    var = 1.0 + 0.5 * jax.random.uniform(k4, (ch,), jnp.float32)
    scale = gamma / jnp.sqrt(var + BN_EPS)
    shift = beta - mean * scale
    return scale, shift


def _conv_w(key, cin, cout):
    # PyTorch Conv1d weight (cout, cin, 1); stored token-major as (cin, cout).
    w = jax.random.normal(key, (cout, cin), jnp.float32) * (1.0 / np.sqrt(cin))
    return jnp.transpose(w)


def _folded_conv_bn(kw, kb, cin, cout):
    """conv (no bias) followed by eval-mode BN, folded: y = x @ w' + b'."""
    w = _conv_w(kw, cin, cout)
    scale, shift = _fold_bn(kb, cout)
    return w * scale[None, :], shift.reshape(1, cout)


def build_params(key, cl_input_channels, cl_num_filters, cl_stride):
    keys = iter(jax.random.split(key, 64))
    c = cl_num_filters

    w_stem, b_stem = _folded_conv_bn(next(keys), next(keys), cl_input_channels, c)

    # _make_layer(planes=c, num_blocks=3, stride=1) then
    # _make_layer(planes=c, num_blocks=4, stride=cl_stride); in_planes == planes
    # throughout (non-"cinjon" config), so a conv shortcut exists iff stride!=1.
    strides = [1, 1, 1] + [cl_stride, 1, 1, 1]
    w1s, b1s, w2s, b2s = [], [], [], []
    w_sc = jnp.zeros((c, c), jnp.float32)
    b_sc = jnp.zeros((1, c), jnp.float32)
    sc_idx = -1
    for i, s in enumerate(strides):
        w1, b1 = _folded_conv_bn(next(keys), next(keys), c, c)
        w2, b2 = _folded_conv_bn(next(keys), next(keys), c, c)
        w1s.append(w1); b1s.append(b1); w2s.append(w2); b2s.append(b2)
        if s != 1:
            assert sc_idx == -1, "at most one strided block supported"
            sc_idx = i
            w_sc, b_sc = _folded_conv_bn(next(keys), next(keys), c, c)

    return {
        "w_stem": w_stem, "b_stem": b_stem,
        "w1": jnp.stack(w1s), "b1": jnp.stack(b1s),   # (7, C, C), (7, 1, C)
        "w2": jnp.stack(w2s), "b2": jnp.stack(b2s),
        "w_sc": w_sc, "b_sc": b_sc,
        "stride": int(cl_stride), "sc_idx": sc_idx,
    }


# ---------------------------- pure-JAX reference ---------------------------- #

def backbone_forward_reference(x_ncl, params):
    hi = jax.lax.Precision.HIGHEST
    stride = params["stride"]
    sc_idx = params["sc_idx"]
    n_blocks = params["w1"].shape[0]

    x = jnp.transpose(x_ncl, (0, 2, 1)).astype(jnp.float32)   # (N, L, Cin)
    h = jnp.maximum(jnp.dot(x, params["w_stem"], precision=hi)
                    + params["b_stem"], 0.0)
    for i in range(n_blocks):
        if i == sc_idx:
            xin = h[:, ::stride, :]
            sc = jnp.dot(xin, params["w_sc"], precision=hi) + params["b_sc"]
        else:
            xin, sc = h, h
        t = jnp.maximum(jnp.dot(xin, params["w1"][i], precision=hi)
                        + params["b1"][i], 0.0)
        h = jnp.maximum(jnp.dot(t, params["w2"][i], precision=hi)
                        + params["b2"][i] + sc, 0.0)
    return jnp.transpose(h, (0, 2, 1))                         # (N, C, L_out)


# ---------------------------------- main ------------------------------------ #

if __name__ == "__main__":
    key = jax.random.PRNGKey(0)
    kx, kp = jax.random.split(key)

    N, C_IN, L = 2, 4, 16
    CL_NUM_FILTERS, CL_STRIDE = 128, 2

    x = jax.random.normal(kx, (N, C_IN, L), dtype=jnp.float32)
    params = build_params(kp, C_IN, CL_NUM_FILTERS, CL_STRIDE)

    out = backbone_forward_pallas(x, params)
    out = jax.block_until_ready(out)

    l_out = -(-L // CL_STRIDE)
    assert out.shape == (N, CL_NUM_FILTERS, l_out), out.shape

    ref = backbone_forward_reference(x, params)
    if not bool(jnp.allclose(out, ref, atol=1e-4, rtol=1e-4)):
        err = float(jnp.max(jnp.abs(out - ref)))
        raise AssertionError(f"Pallas output mismatch vs JAX reference (max abs err {err})")

    print("KERNEL_OK")
</pallas_src>

<mosaic_0001>
module attributes {stable_mosaic.version = 11 : i64} {
  func.func @_backbone_kernel(%arg0: i32, %arg1: memref<16x4xf32, #tpu.memory_space<vmem>>, %arg2: memref<4x128xf32, #tpu.memory_space<vmem>>, %arg3: memref<1x128xf32, #tpu.memory_space<vmem>>, %arg4: memref<7x128x128xf32, #tpu.memory_space<vmem>>, %arg5: memref<7x1x128xf32, #tpu.memory_space<vmem>>, %arg6: memref<7x128x128xf32, #tpu.memory_space<vmem>>, %arg7: memref<7x1x128xf32, #tpu.memory_space<vmem>>, %arg8: memref<128x128xf32, #tpu.memory_space<vmem>>, %arg9: memref<1x128xf32, #tpu.memory_space<vmem>>, %arg10: memref<8x128xf32, #tpu.memory_space<vmem>>) attributes {dimension_semantics = [#tpu.dimension_semantics<parallel>], iteration_bounds = array<i64: 2>, scalar_prefetch = 0 : i64, scratch_operands = 0 : i64, tpu.core_type = #tpu.core_type<tc>, window_params = [{transform_indices = @transform_0, window_bounds = array<i64: 16, 4>}, {pipeline_mode = #tpu.pipeline_mode<synchronous>, transform_indices = @transform_1, window_bounds = array<i64: 4, 128>}, {pipeline_mode = #tpu.pipeline_mode<synchronous>, transform_indices = @transform_2, window_bounds = array<i64: 1, 128>}, {pipeline_mode = #tpu.pipeline_mode<synchronous>, transform_indices = @transform_3, window_bounds = array<i64: 7, 128, 128>}, {pipeline_mode = #tpu.pipeline_mode<synchronous>, transform_indices = @transform_4, window_bounds = array<i64: 7, 1, 128>}, {pipeline_mode = #tpu.pipeline_mode<synchronous>, transform_indices = @transform_5, window_bounds = array<i64: 7, 128, 128>}, {pipeline_mode = #tpu.pipeline_mode<synchronous>, transform_indices = @transform_6, window_bounds = array<i64: 7, 1, 128>}, {pipeline_mode = #tpu.pipeline_mode<synchronous>, transform_indices = @transform_7, window_bounds = array<i64: 128, 128>}, {pipeline_mode = #tpu.pipeline_mode<synchronous>, transform_indices = @transform_8, window_bounds = array<i64: 1, 128>}, {transform_indices = @transform_9, window_bounds = array<i64: 8, 128>}]} {
    %c0 = arith.constant 0 : index
    %c0_0 = arith.constant 0 : index
    %0 = vector.load %arg1[%c0, %c0_0] : memref<16x4xf32, #tpu.memory_space<vmem>>, vector<16x4xf32>
    %c0_1 = arith.constant 0 : index
    %c0_2 = arith.constant 0 : index
    %1 = vector.load %arg2[%c0_1, %c0_2] : memref<4x128xf32, #tpu.memory_space<vmem>>, vector<4x128xf32>
    %cst = arith.constant dense<0.000000e+00> : vector<16x128xf32>
    %2 = tpu.matmul %0, %1, %cst {dimension_numbers = #tpu.dot_dimension_numbers<[1], [0], [0], [1], [0, 0, 1, 1], [], []>} : vector<16x4xf32>, vector<4x128xf32>, vector<16x128xf32> -> vector<16x128xf32>
    %c0_3 = arith.constant 0 : index
    %c0_4 = arith.constant 0 : index
    %3 = vector.load %arg3[%c0_3, %c0_4] : memref<1x128xf32, #tpu.memory_space<vmem>>, vector<1x128xf32>
    %4 = vector.broadcast %3 : vector<1x128xf32> to vector<16x128xf32>
    %5 = arith.addf %2, %4 : vector<16x128xf32>
    %cst_5 = arith.constant 0.000000e+00 : f32
    %6 = vector.broadcast %cst_5 : f32 to vector<16x128xf32>
    %7 = arith.maximumf %5, %6 : vector<16x128xf32>
    %c0_6 = arith.constant 0 : index
    %c0_7 = arith.constant 0 : index
    %c0_8 = arith.constant 0 : index
    %8 = vector.load %arg4[%c0_6, %c0_7, %c0_8] : memref<7x128x128xf32, #tpu.memory_space<vmem>>, vector<1x128x128xf32>
    %9 = vector.shape_cast %8 : vector<1x128x128xf32> to vector<128x128xf32>
    %cst_9 = arith.constant dense<0.000000e+00> : vector<16x128xf32>
    %10 = tpu.matmul %7, %9, %cst_9 {dimension_numbers = #tpu.dot_dimension_numbers<[1], [0], [0], [1], [0, 0, 1, 1], [], []>} : vector<16x128xf32>, vector<128x128xf32>, vector<16x128xf32> -> vector<16x128xf32>
    %c0_10 = arith.constant 0 : index
    %c0_11 = arith.constant 0 : index
    %c0_12 = arith.constant 0 : index
    %11 = vector.load %arg5[%c0_10, %c0_11, %c0_12] : memref<7x1x128xf32, #tpu.memory_space<vmem>>, vector<1x1x128xf32>
    %12 = vector.shape_cast %11 : vector<1x1x128xf32> to vector<1x128xf32>
    %13 = vector.broadcast %12 : vector<1x128xf32> to vector<16x128xf32>
    %14 = arith.addf %10, %13 : vector<16x128xf32>
    %cst_13 = arith.constant 0.000000e+00 : f32
    %15 = vector.broadcast %cst_13 : f32 to vector<16x128xf32>
    %16 = arith.maximumf %14, %15 : vector<16x128xf32>
    %c0_14 = arith.constant 0 : index
    %c0_15 = arith.constant 0 : index
    %c0_16 = arith.constant 0 : index
    %17 = vector.load %arg6[%c0_14, %c0_15, %c0_16] : memref<7x128x128xf32, #tpu.memory_space<vmem>>, vector<1x128x128xf32>
    %18 = vector.shape_cast %17 : vector<1x128x128xf32> to vector<128x128xf32>
    %cst_17 = arith.constant dense<0.000000e+00> : vector<16x128xf32>
    %19 = tpu.matmul %16, %18, %cst_17 {dimension_numbers = #tpu.dot_dimension_numbers<[1], [0], [0], [1], [0, 0, 1, 1], [], []>} : vector<16x128xf32>, vector<128x128xf32>, vector<16x128xf32> -> vector<16x128xf32>
    %c0_18 = arith.constant 0 : index
    %c0_19 = arith.constant 0 : index
    %c0_20 = arith.constant 0 : index
    %20 = vector.load %arg7[%c0_18, %c0_19, %c0_20] : memref<7x1x128xf32, #tpu.memory_space<vmem>>, vector<1x1x128xf32>
    %21 = vector.shape_cast %20 : vector<1x1x128xf32> to vector<1x128xf32>
    %22 = vector.broadcast %21 : vector<1x128xf32> to vector<16x128xf32>
    %23 = arith.addf %19, %22 : vector<16x128xf32>
    %24 = arith.addf %23, %7 : vector<16x128xf32>
    %cst_21 = arith.constant 0.000000e+00 : f32
    %25 = vector.broadcast %cst_21 : f32 to vector<16x128xf32>
    %26 = arith.maximumf %24, %25 : vector<16x128xf32>
    %c1 = arith.constant 1 : index
    %c0_22 = arith.constant 0 : index
    %c0_23 = arith.constant 0 : index
    %27 = vector.load %arg4[%c1, %c0_22, %c0_23] : memref<7x128x128xf32, #tpu.memory_space<vmem>>, vector<1x128x128xf32>
    %28 = vector.shape_cast %27 : vector<1x128x128xf32> to vector<128x128xf32>
    %cst_24 = arith.constant dense<0.000000e+00> : vector<16x128xf32>
    %29 = tpu.matmul %26, %28, %cst_24 {dimension_numbers = #tpu.dot_dimension_numbers<[1], [0], [0], [1], [0, 0, 1, 1], [], []>} : vector<16x128xf32>, vector<128x128xf32>, vector<16x128xf32> -> vector<16x128xf32>
    %c1_25 = arith.constant 1 : index
    %c0_26 = arith.constant 0 : index
    %c0_27 = arith.constant 0 : index
    %30 = vector.load %arg5[%c1_25, %c0_26, %c0_27] : memref<7x1x128xf32, #tpu.memory_space<vmem>>, vector<1x1x128xf32>
    %31 = vector.shape_cast %30 : vector<1x1x128xf32> to vector<1x128xf32>
    %32 = vector.broadcast %31 : vector<1x128xf32> to vector<16x128xf32>
    %33 = arith.addf %29, %32 : vector<16x128xf32>
    %cst_28 = arith.constant 0.000000e+00 : f32
    %34 = vector.broadcast %cst_28 : f32 to vector<16x128xf32>
    %35 = arith.maximumf %33, %34 : vector<16x128xf32>
    %c1_29 = arith.constant 1 : index
    %c0_30 = arith.constant 0 : index
    %c0_31 = arith.constant 0 : index
    %36 = vector.load %arg6[%c1_29, %c0_30, %c0_31] : memref<7x128x128xf32, #tpu.memory_space<vmem>>, vector<1x128x128xf32>
    %37 = vector.shape_cast %36 : vector<1x128x128xf32> to vector<128x128xf32>
    %cst_32 = arith.constant dense<0.000000e+00> : vector<16x128xf32>
    %38 = tpu.matmul %35, %37, %cst_32 {dimension_numbers = #tpu.dot_dimension_numbers<[1], [0], [0], [1], [0, 0, 1, 1], [], []>} : vector<16x128xf32>, vector<128x128xf32>, vector<16x128xf32> -> vector<16x128xf32>
    %c1_33 = arith.constant 1 : index
    %c0_34 = arith.constant 0 : index
    %c0_35 = arith.constant 0 : index
    %39 = vector.load %arg7[%c1_33, %c0_34, %c0_35] : memref<7x1x128xf32, #tpu.memory_space<vmem>>, vector<1x1x128xf32>
    %40 = vector.shape_cast %39 : vector<1x1x128xf32> to vector<1x128xf32>
    %41 = vector.broadcast %40 : vector<1x128xf32> to vector<16x128xf32>
    %42 = arith.addf %38, %41 : vector<16x128xf32>
    %43 = arith.addf %42, %26 : vector<16x128xf32>
    %cst_36 = arith.constant 0.000000e+00 : f32
    %44 = vector.broadcast %cst_36 : f32 to vector<16x128xf32>
    %45 = arith.maximumf %43, %44 : vector<16x128xf32>
    %c2 = arith.constant 2 : index
    %c0_37 = arith.constant 0 : index
    %c0_38 = arith.constant 0 : index
    %46 = vector.load %arg4[%c2, %c0_37, %c0_38] : memref<7x128x128xf32, #tpu.memory_space<vmem>>, vector<1x128x128xf32>
    %47 = vector.shape_cast %46 : vector<1x128x128xf32> to vector<128x128xf32>
    %cst_39 = arith.constant dense<0.000000e+00> : vector<16x128xf32>
    %48 = tpu.matmul %45, %47, %cst_39 {dimension_numbers = #tpu.dot_dimension_numbers<[1], [0], [0], [1], [0, 0, 1, 1], [], []>} : vector<16x128xf32>, vector<128x128xf32>, vector<16x128xf32> -> vector<16x128xf32>
    %c2_40 = arith.constant 2 : index
    %c0_41 = arith.constant 0 : index
    %c0_42 = arith.constant 0 : index
    %49 = vector.load %arg5[%c2_40, %c0_41, %c0_42] : memref<7x1x128xf32, #tpu.memory_space<vmem>>, vector<1x1x128xf32>
    %50 = vector.shape_cast %49 : vector<1x1x128xf32> to vector<1x128xf32>
    %51 = vector.broadcast %50 : vector<1x128xf32> to vector<16x128xf32>
    %52 = arith.addf %48, %51 : vector<16x128xf32>
    %cst_43 = arith.constant 0.000000e+00 : f32
    %53 = vector.broadcast %cst_43 : f32 to vector<16x128xf32>
    %54 = arith.maximumf %52, %53 : vector<16x128xf32>
    %c2_44 = arith.constant 2 : index
    %c0_45 = arith.constant 0 : index
    %c0_46 = arith.constant 0 : index
    %55 = vector.load %arg6[%c2_44, %c0_45, %c0_46] : memref<7x128x128xf32, #tpu.memory_space<vmem>>, vector<1x128x128xf32>
    %56 = vector.shape_cast %55 : vector<1x128x128xf32> to vector<128x128xf32>
    %cst_47 = arith.constant dense<0.000000e+00> : vector<16x128xf32>
    %57 = tpu.matmul %54, %56, %cst_47 {dimension_numbers = #tpu.dot_dimension_numbers<[1], [0], [0], [1], [0, 0, 1, 1], [], []>} : vector<16x128xf32>, vector<128x128xf32>, vector<16x128xf32> -> vector<16x128xf32>
    %c2_48 = arith.constant 2 : index
    %c0_49 = arith.constant 0 : index
    %c0_50 = arith.constant 0 : index
    %58 = vector.load %arg7[%c2_48, %c0_49, %c0_50] : memref<7x1x128xf32, #tpu.memory_space<vmem>>, vector<1x1x128xf32>
    %59 = vector.shape_cast %58 : vector<1x1x128xf32> to vector<1x128xf32>
    %60 = vector.broadcast %59 : vector<1x128xf32> to vector<16x128xf32>
    %61 = arith.addf %57, %60 : vector<16x128xf32>
    %62 = arith.addf %61, %45 : vector<16x128xf32>
    %cst_51 = arith.constant 0.000000e+00 : f32
    %63 = vector.broadcast %cst_51 : f32 to vector<16x128xf32>
    %64 = arith.maximumf %62, %63 : vector<16x128xf32>
    %65 = vector.extract_strided_slice %64 {offsets = [0, 0], sizes = [8, 128], strides = [1, 1]} : vector<16x128xf32> to vector<8x128xf32>
    %c0_52 = arith.constant 0 : index
    %c0_53 = arith.constant 0 : index
    %66 = vector.load %arg8[%c0_52, %c0_53] : memref<128x128xf32, #tpu.memory_space<vmem>>, vector<128x128xf32>
    %cst_54 = arith.constant dense<0.000000e+00> : vector<8x128xf32>
    %67 = tpu.matmul %65, %66, %cst_54 {dimension_numbers = #tpu.dot_dimension_numbers<[1], [0], [0], [1], [0, 0, 1, 1], [], []>} : vector<8x128xf32>, vector<128x128xf32>, vector<8x128xf32> -> vector<8x128xf32>
    %c0_55 = arith.constant 0 : index
    %c0_56 = arith.constant 0 : index
    %68 = vector.load %arg9[%c0_55, %c0_56] : memref<1x128xf32, #tpu.memory_space<vmem>>, vector<1x128xf32>
    %69 = vector.broadcast %68 : vector<1x128xf32> to vector<8x128xf32>
    %70 = arith.addf %67, %69 : vector<8x128xf32>
    %c3 = arith.constant 3 : index
    %c0_57 = arith.constant 0 : index
    %c0_58 = arith.constant 0 : index
    %71 = vector.load %arg4[%c3, %c0_57, %c0_58] : memref<7x128x128xf32, #tpu.memory_space<vmem>>, vector<1x128x128xf32>
    %72 = vector.shape_cast %71 : vector<1x128x128xf32> to vector<128x128xf32>
    %cst_59 = arith.constant dense<0.000000e+00> : vector<8x128xf32>
    %73 = tpu.matmul %65, %72, %cst_59 {dimension_numbers = #tpu.dot_dimension_numbers<[1], [0], [0], [1], [0, 0, 1, 1], [], []>} : vector<8x128xf32>, vector<128x128xf32>, vector<8x128xf32> -> vector<8x128xf32>
    %c3_60 = arith.constant 3 : index
    %c0_61 = arith.constant 0 : index
    %c0_62 = arith.constant 0 : index
    %74 = vector.load %arg5[%c3_60, %c0_61, %c0_62] : memref<7x1x128xf32, #tpu.memory_space<vmem>>, vector<1x1x128xf32>
    %75 = vector.shape_cast %74 : vector<1x1x128xf32> to vector<1x128xf32>
    %76 = vector.broadcast %75 : vector<1x128xf32> to vector<8x128xf32>
    %77 = arith.addf %73, %76 : vector<8x128xf32>
    %cst_63 = arith.constant 0.000000e+00 : f32
    %78 = vector.broadcast %cst_63 : f32 to vector<8x128xf32>
    %79 = arith.maximumf %77, %78 : vector<8x128xf32>
    %c3_64 = arith.constant 3 : index
    %c0_65 = arith.constant 0 : index
    %c0_66 = arith.constant 0 : index
    %80 = vector.load %arg6[%c3_64, %c0_65, %c0_66] : memref<7x128x128xf32, #tpu.memory_space<vmem>>, vector<1x128x128xf32>
    %81 = vector.shape_cast %80 : vector<1x128x128xf32> to vector<128x128xf32>
    %cst_67 = arith.constant dense<0.000000e+00> : vector<8x128xf32>
    %82 = tpu.matmul %79, %81, %cst_67 {dimension_numbers = #tpu.dot_dimension_numbers<[1], [0], [0], [1], [0, 0, 1, 1], [], []>} : vector<8x128xf32>, vector<128x128xf32>, vector<8x128xf32> -> vector<8x128xf32>
    %c3_68 = arith.constant 3 : index
    %c0_69 = arith.constant 0 : index
    %c0_70 = arith.constant 0 : index
    %83 = vector.load %arg7[%c3_68, %c0_69, %c0_70] : memref<7x1x128xf32, #tpu.memory_space<vmem>>, vector<1x1x128xf32>
    %84 = vector.shape_cast %83 : vector<1x1x128xf32> to vector<1x128xf32>
    %85 = vector.broadcast %84 : vector<1x128xf32> to vector<8x128xf32>
    %86 = arith.addf %82, %85 : vector<8x128xf32>
    %87 = arith.addf %86, %70 : vector<8x128xf32>
    %cst_71 = arith.constant 0.000000e+00 : f32
    %88 = vector.broadcast %cst_71 : f32 to vector<8x128xf32>
    %89 = arith.maximumf %87, %88 : vector<8x128xf32>
    %c4 = arith.constant 4 : index
    %c0_72 = arith.constant 0 : index
    %c0_73 = arith.constant 0 : index
    %90 = vector.load %arg4[%c4, %c0_72, %c0_73] : memref<7x128x128xf32, #tpu.memory_space<vmem>>, vector<1x128x128xf32>
    %91 = vector.shape_cast %90 : vector<1x128x128xf32> to vector<128x128xf32>
    %cst_74 = arith.constant dense<0.000000e+00> : vector<8x128xf32>
    %92 = tpu.matmul %89, %91, %cst_74 {dimension_numbers = #tpu.dot_dimension_numbers<[1], [0], [0], [1], [0, 0, 1, 1], [], []>} : vector<8x128xf32>, vector<128x128xf32>, vector<8x128xf32> -> vector<8x128xf32>
    %c4_75 = arith.constant 4 : index
    %c0_76 = arith.constant 0 : index
    %c0_77 = arith.constant 0 : index
    %93 = vector.load %arg5[%c4_75, %c0_76, %c0_77] : memref<7x1x128xf32, #tpu.memory_space<vmem>>, vector<1x1x128xf32>
    %94 = vector.shape_cast %93 : vector<1x1x128xf32> to vector<1x128xf32>
    %95 = vector.broadcast %94 : vector<1x128xf32> to vector<8x128xf32>
    %96 = arith.addf %92, %95 : vector<8x128xf32>
    %cst_78 = arith.constant 0.000000e+00 : f32
    %97 = vector.broadcast %cst_78 : f32 to vector<8x128xf32>
    %98 = arith.maximumf %96, %97 : vector<8x128xf32>
    %c4_79 = arith.constant 4 : index
    %c0_80 = arith.constant 0 : index
    %c0_81 = arith.constant 0 : index
    %99 = vector.load %arg6[%c4_79, %c0_80, %c0_81] : memref<7x128x128xf32, #tpu.memory_space<vmem>>, vector<1x128x128xf32>
    %100 = vector.shape_cast %99 : vector<1x128x128xf32> to vector<128x128xf32>
    %cst_82 = arith.constant dense<0.000000e+00> : vector<8x128xf32>
    %101 = tpu.matmul %98, %100, %cst_82 {dimension_numbers = #tpu.dot_dimension_numbers<[1], [0], [0], [1], [0, 0, 1, 1], [], []>} : vector<8x128xf32>, vector<128x128xf32>, vector<8x128xf32> -> vector<8x128xf32>
    %c4_83 = arith.constant 4 : index
    %c0_84 = arith.constant 0 : index
    %c0_85 = arith.constant 0 : index
    %102 = vector.load %arg7[%c4_83, %c0_84, %c0_85] : memref<7x1x128xf32, #tpu.memory_space<vmem>>, vector<1x1x128xf32>
    %103 = vector.shape_cast %102 : vector<1x1x128xf32> to vector<1x128xf32>
    %104 = vector.broadcast %103 : vector<1x128xf32> to vector<8x128xf32>
    %105 = arith.addf %101, %104 : vector<8x128xf32>
    %106 = arith.addf %105, %89 : vector<8x128xf32>
    %cst_86 = arith.constant 0.000000e+00 : f32
    %107 = vector.broadcast %cst_86 : f32 to vector<8x128xf32>
    %108 = arith.maximumf %106, %107 : vector<8x128xf32>
    %c5 = arith.constant 5 : index
    %c0_87 = arith.constant 0 : index
    %c0_88 = arith.constant 0 : index
    %109 = vector.load %arg4[%c5, %c0_87, %c0_88] : memref<7x128x128xf32, #tpu.memory_space<vmem>>, vector<1x128x128xf32>
    %110 = vector.shape_cast %109 : vector<1x128x128xf32> to vector<128x128xf32>
    %cst_89 = arith.constant dense<0.000000e+00> : vector<8x128xf32>
    %111 = tpu.matmul %108, %110, %cst_89 {dimension_numbers = #tpu.dot_dimension_numbers<[1], [0], [0], [1], [0, 0, 1, 1], [], []>} : vector<8x128xf32>, vector<128x128xf32>, vector<8x128xf32> -> vector<8x128xf32>
    %c5_90 = arith.constant 5 : index
    %c0_91 = arith.constant 0 : index
    %c0_92 = arith.constant 0 : index
    %112 = vector.load %arg5[%c5_90, %c0_91, %c0_92] : memref<7x1x128xf32, #tpu.memory_space<vmem>>, vector<1x1x128xf32>
    %113 = vector.shape_cast %112 : vector<1x1x128xf32> to vector<1x128xf32>
    %114 = vector.broadcast %113 : vector<1x128xf32> to vector<8x128xf32>
    %115 = arith.addf %111, %114 : vector<8x128xf32>
    %cst_93 = arith.constant 0.000000e+00 : f32
    %116 = vector.broadcast %cst_93 : f32 to vector<8x128xf32>
    %117 = arith.maximumf %115, %116 : vector<8x128xf32>
    %c5_94 = arith.constant 5 : index
    %c0_95 = arith.constant 0 : index
    %c0_96 = arith.constant 0 : index
    %118 = vector.load %arg6[%c5_94, %c0_95, %c0_96] : memref<7x128x128xf32, #tpu.memory_space<vmem>>, vector<1x128x128xf32>
    %119 = vector.shape_cast %118 : vector<1x128x128xf32> to vector<128x128xf32>
    %cst_97 = arith.constant dense<0.000000e+00> : vector<8x128xf32>
    %120 = tpu.matmul %117, %119, %cst_97 {dimension_numbers = #tpu.dot_dimension_numbers<[1], [0], [0], [1], [0, 0, 1, 1], [], []>} : vector<8x128xf32>, vector<128x128xf32>, vector<8x128xf32> -> vector<8x128xf32>
    %c5_98 = arith.constant 5 : index
    %c0_99 = arith.constant 0 : index
    %c0_100 = arith.constant 0 : index
    %121 = vector.load %arg7[%c5_98, %c0_99, %c0_100] : memref<7x1x128xf32, #tpu.memory_space<vmem>>, vector<1x1x128xf32>
    %122 = vector.shape_cast %121 : vector<1x1x128xf32> to vector<1x128xf32>
    %123 = vector.broadcast %122 : vector<1x128xf32> to vector<8x128xf32>
    %124 = arith.addf %120, %123 : vector<8x128xf32>
    %125 = arith.addf %124, %108 : vector<8x128xf32>
    %cst_101 = arith.constant 0.000000e+00 : f32
    %126 = vector.broadcast %cst_101 : f32 to vector<8x128xf32>
    %127 = arith.maximumf %125, %126 : vector<8x128xf32>
    %c6 = arith.constant 6 : index
    %c0_102 = arith.constant 0 : index
    %c0_103 = arith.constant 0 : index
    %128 = vector.load %arg4[%c6, %c0_102, %c0_103] : memref<7x128x128xf32, #tpu.memory_space<vmem>>, vector<1x128x128xf32>
    %129 = vector.shape_cast %128 : vector<1x128x128xf32> to vector<128x128xf32>
    %cst_104 = arith.constant dense<0.000000e+00> : vector<8x128xf32>
    %130 = tpu.matmul %127, %129, %cst_104 {dimension_numbers = #tpu.dot_dimension_numbers<[1], [0], [0], [1], [0, 0, 1, 1], [], []>} : vector<8x128xf32>, vector<128x128xf32>, vector<8x128xf32> -> vector<8x128xf32>
    %c6_105 = arith.constant 6 : index
    %c0_106 = arith.constant 0 : index
    %c0_107 = arith.constant 0 : index
    %131 = vector.load %arg5[%c6_105, %c0_106, %c0_107] : memref<7x1x128xf32, #tpu.memory_space<vmem>>, vector<1x1x128xf32>
    %132 = vector.shape_cast %131 : vector<1x1x128xf32> to vector<1x128xf32>
    %133 = vector.broadcast %132 : vector<1x128xf32> to vector<8x128xf32>
    %134 = arith.addf %130, %133 : vector<8x128xf32>
    %cst_108 = arith.constant 0.000000e+00 : f32
    %135 = vector.broadcast %cst_108 : f32 to vector<8x128xf32>
    %136 = arith.maximumf %134, %135 : vector<8x128xf32>
    %c6_109 = arith.constant 6 : index
    %c0_110 = arith.constant 0 : index
    %c0_111 = arith.constant 0 : index
    %137 = vector.load %arg6[%c6_109, %c0_110, %c0_111] : memref<7x128x128xf32, #tpu.memory_space<vmem>>, vector<1x128x128xf32>
    %138 = vector.shape_cast %137 : vector<1x128x128xf32> to vector<128x128xf32>
    %cst_112 = arith.constant dense<0.000000e+00> : vector<8x128xf32>
    %139 = tpu.matmul %136, %138, %cst_112 {dimension_numbers = #tpu.dot_dimension_numbers<[1], [0], [0], [1], [0, 0, 1, 1], [], []>} : vector<8x128xf32>, vector<128x128xf32>, vector<8x128xf32> -> vector<8x128xf32>
    %c6_113 = arith.constant 6 : index
    %c0_114 = arith.constant 0 : index
    %c0_115 = arith.constant 0 : index
    %140 = vector.load %arg7[%c6_113, %c0_114, %c0_115] : memref<7x1x128xf32, #tpu.memory_space<vmem>>, vector<1x1x128xf32>
    %141 = vector.shape_cast %140 : vector<1x1x128xf32> to vector<1x128xf32>
    %142 = vector.broadcast %141 : vector<1x128xf32> to vector<8x128xf32>
    %143 = arith.addf %139, %142 : vector<8x128xf32>
    %144 = arith.addf %143, %127 : vector<8x128xf32>
    %cst_116 = arith.constant 0.000000e+00 : f32
    %145 = vector.broadcast %cst_116 : f32 to vector<8x128xf32>
    %146 = arith.maximumf %144, %145 : vector<8x128xf32>
    %c0_117 = arith.constant 0 : index
    %c0_118 = arith.constant 0 : index
    %147 = vector.load %arg10[%c0_117, %c0_118] : memref<8x128xf32, #tpu.memory_space<vmem>>, vector<8x128xf32>
    tpu.vector_store %arg10[%c0_117, %c0_118], %146 {strides = array<i32>} : memref<8x128xf32, #tpu.memory_space<vmem>>, vector<8x128xf32>,
    return
  }
  func.func @transform_0(%arg0: i32) -> (i32, i32) {
    %c0_i32 = arith.constant 0 : i32
    %c0_i32_0 = arith.constant 0 : i32
    return %arg0, %c0_i32 : i32, i32
  }
  func.func @transform_1(%arg0: i32) -> (i32, i32) {
    %c0_i32 = arith.constant 0 : i32
    %c0_i32_0 = arith.constant 0 : i32
    %c0_i32_1 = arith.constant 0 : i32
    return %c0_i32, %c0_i32_0 : i32, i32
  }
  func.func @transform_2(%arg0: i32) -> (i32, i32) {
    %c0_i32 = arith.constant 0 : i32
    %c0_i32_0 = arith.constant 0 : i32
    %c0_i32_1 = arith.constant 0 : i32
    return %c0_i32, %c0_i32_0 : i32, i32
  }
  func.func @transform_3(%arg0: i32) -> (i32, i32, i32) {
    %c0_i32 = arith.constant 0 : i32
    %c0_i32_0 = arith.constant 0 : i32
    %c0_i32_1 = arith.constant 0 : i32
    %c0_i32_2 = arith.constant 0 : i32
    return %c0_i32, %c0_i32_0, %c0_i32_1 : i32, i32, i32
  }
  func.func @transform_4(%arg0: i32) -> (i32, i32, i32) {
    %c0_i32 = arith.constant 0 : i32
    %c0_i32_0 = arith.constant 0 : i32
    %c0_i32_1 = arith.constant 0 : i32
    %c0_i32_2 = arith.constant 0 : i32
    return %c0_i32, %c0_i32_0, %c0_i32_1 : i32, i32, i32
  }
  func.func @transform_5(%arg0: i32) -> (i32, i32, i32) {
    %c0_i32 = arith.constant 0 : i32
    %c0_i32_0 = arith.constant 0 : i32
    %c0_i32_1 = arith.constant 0 : i32
    %c0_i32_2 = arith.constant 0 : i32
    return %c0_i32, %c0_i32_0, %c0_i32_1 : i32, i32, i32
  }
  func.func @transform_6(%arg0: i32) -> (i32, i32, i32) {
    %c0_i32 = arith.constant 0 : i32
    %c0_i32_0 = arith.constant 0 : i32
    %c0_i32_1 = arith.constant 0 : i32
    %c0_i32_2 = arith.constant 0 : i32
    return %c0_i32, %c0_i32_0, %c0_i32_1 : i32, i32, i32
  }
  func.func @transform_7(%arg0: i32) -> (i32, i32) {
    %c0_i32 = arith.constant 0 : i32
    %c0_i32_0 = arith.constant 0 : i32
    %c0_i32_1 = arith.constant 0 : i32
    return %c0_i32, %c0_i32_0 : i32, i32
  }
  func.func @transform_8(%arg0: i32) -> (i32, i32) {
    %c0_i32 = arith.constant 0 : i32
    %c0_i32_0 = arith.constant 0 : i32
    %c0_i32_1 = arith.constant 0 : i32
    return %c0_i32, %c0_i32_0 : i32, i32
  }
  func.func @transform_9(%arg0: i32) -> (i32, i32) {
    %c0_i32 = arith.constant 0 : i32
    %c0_i32_0 = arith.constant 0 : i32
    return %arg0, %c0_i32 : i32, i32
  }
}

</mosaic_0001>

<llo_original>
// kernel: tpu_custom_call.1
$region0: #{tpu_custom_call.1}
  #allocation0 [shape = 'u32[]', space=smem, size = 0x4, offset = 0x4, fixed_abs, tag = 'smem constant byte address 0x4 - core index']
  #allocation1 [shape = 'u32[72,128]{1,0:T(1,128)}', space=vmem, size = 0x9000, scoped, tag = 'internal scratch']
  %s0 = inlined_call_operand.vmem [shape: f32[32,4], index: 0, kind: input, shape index: {}]
  %s1 = inlined_call_operand.vmem [shape: f32[4,128], index: 1, kind: input, shape index: {}]
  %s2 = inlined_call_operand.vmem [shape: f32[1,128], index: 2, kind: input, shape index: {}]
  %s3 = inlined_call_operand.hbm [shape: f32[7,128,128], index: 3, kind: input, shape index: {}]
  %s4 = inlined_call_operand.vmem [shape: f32[7,1,128], index: 4, kind: input, shape index: {}]
  %s5 = inlined_call_operand.hbm [shape: f32[7,128,128], index: 5, kind: input, shape index: {}]
  %s6 = inlined_call_operand.vmem [shape: f32[7,1,128], index: 6, kind: input, shape index: {}]
  %s7 = inlined_call_operand.hbm [shape: f32[128,128], index: 7, kind: input, shape index: {}]
  %s8 = inlined_call_operand.vmem [shape: f32[1,128], index: 8, kind: input, shape index: {}]
  %s9 = inlined_call_operand.hbm [shape: f32[16,128], index: 9, kind: output, shape index: {}]
  %s10 = sld [smem:[#allocation0]]
  $region81: #{tpu_custom_call.1} parent=0
    _
  %s12 = ssub.s32 1, %s10
  %s13 = scalar_select 0, %s12, %s10
  $region1: #{tpu_custom_call.1} parent=0
    #allocation2 [shape = 'u8[458752]{0}', space=vmem, size = 0x70000, scoped, tag = 'input window, operand 3, single buffered']
    #allocation3 [shape = 's32[2]{0}', space=sflag, size = 0x8, scoped, tag = 'scoped memory for tpu_custom_call.1']
    #allocation4 [shape = 's32[2]{0}', space=sflag, size = 0x8, scoped, tag = 'scoped memory for tpu_custom_call.1']
    #allocation5 [shape = 'u8[458752]{0}', space=vmem, size = 0x70000, scoped, tag = 'input window, operand 5, single buffered']
    #allocation6 [shape = 's32[1]{0}', space=sflag, size = 0x4, scoped, tag = 'scoped memory for tpu_custom_call.1']
    #allocation7 [shape = 'u8[65536]{0}', space=vmem, size = 0x10000, scoped, tag = 'input window, operand 7, single buffered']
    #allocation8 [shape = 'u8[8192]{0}', space=vmem, size = 0x2000, scoped, tag = 'output window, operand 0']
    %14 = vsyncpa [#allocation3], 0
    %15 = vsyncpa [#allocation6], 0
    %16 = vsyncpa [#allocation4], 0
    %s17 = scalar_lea.sflag [#allocation4], 1
    %18 = vsyncpa %s17, 0
    loop: start=0, step=1, limit=4
    $region2: #{tpu_custom_call.1} parent=1 // loop_pre_header
      _
    $region3: #{tpu_custom_call.1} parent=1 // loop_header
      %s20 = sphi 0, %s24
      %p21 = scmp.ge.s32.totalorder %s20, 4
      %s30 = sphi 0, %s32
      %s33 = sphi 0, %s30
      %s34 = sphi 0, %s33
      %s50 = sphi 0, %s34
      %s54 = sphi 0, %s54
      %s56 = sphi 0, %s54
      %s57 = sphi 0, %s56
      %s71 = sphi 0, %s57
      %s75 = sphi 0, %s75
      %s77 = sphi 0, %s75
      %s78 = sphi 0, %s77
      %s92 = sphi 0, %s78
      %s96 = sphi 0, %s96
      %s98 = sphi 0, %s96
      %s99 = sphi 0, %s98
      %s113 = sphi 0, %s99
      %s117 = sphi 0, %s117
      %s119 = sphi 0, %s117
      %s120 = sphi 0, %s119
      %s134 = sphi 0, %s120
      %s138 = sphi 0, %s138
      %s140 = sphi 0, %s138
      %s141 = sphi 0, %s140
      %s155 = sphi 0, %s141
      %s159 = sphi 0, %s159
      %s161 = sphi 0, %s159
      %s162 = sphi 0, %s161
      %s176 = sphi 0, %s162
      %s180 = sphi 0, %s180
      %s182 = sphi 0, %s180
      %s183 = sphi 0, %s182
      %s197 = sphi 0, %s183
      %s201 = sphi 0, %s201
      %s203 = sphi 0, %s201
      %s204 = sphi 0, %s203
      %s218 = sphi 0, %s204
      %s224 = sphi 0, %s226
      %s227 = sphi 0, %s224
      %s228 = sphi 0, %s227
      %s244 = sphi 0, %s228
    $region4: #{tpu_custom_call.1} parent=1 // loop_header_branch
      %23 = sbr.rel (%p21) target = $region8
    $region5: #{tpu_custom_call.1} parent=1 // loop_body
      %s25 = ssub.s32 %s20, 1
      %s26 = ssub.s32 %s20, 2
      %s27 = sadd.s32 %s20, 1
      %s28 = ssub.s32 %s20, %s27
      %p29 = scmp.eq.s32.totalorder %s28, 0
      %s31 = sadd.s32 %s30, 1
      %s32 = scalar_select %p29, %s30, %s31
      %p35 = pneg %p29
      %p36 = scmp.eq.s32.totalorder %s20, 1
      %p37 = por %p35, %p36
      %p38 = scmp.ne.s32.totalorder %s30, %s33
      %p39 = scmp.eq.s32.totalorder %s20, 0
      %p40 = por %p38, %p39
      %p41 = scmp.ne.s32.totalorder %s30, %s33
      %p42 = scmp.eq.s32.totalorder %s25, 1
      %p43 = por %p41, %p42
      %p44 = scmp.ne.s32.totalorder %s33, %s34
      %p45 = scmp.eq.s32.totalorder %s25, 0
      %p46 = por %p44, %p45
      %p47 = scmp.ne.s32.totalorder %s33, %s34
      %p48 = scmp.eq.s32.totalorder %s26, 1
      %p49 = por %p47, %p48
      %p51 = scmp.ne.s32.totalorder %s34, %s50
      %p52 = scmp.eq.s32.totalorder %s26, 0
      %p53 = por %p51, %p52
      %s55 = sadd.s32 %s54, 1
      %p58 = scmp.eq.s32.totalorder %s20, 1
      %p59 = scmp.ne.s32.totalorder %s54, %s56
      %p60 = scmp.eq.s32.totalorder %s20, 0
      %p61 = por %p59, %p60
      %p62 = scmp.ne.s32.totalorder %s54, %s56
      %p63 = scmp.eq.s32.totalorder %s25, 1
      %p64 = por %p62, %p63
      %p65 = scmp.ne.s32.totalorder %s56, %s57
      %p66 = scmp.eq.s32.totalorder %s25, 0
      %p67 = por %p65, %p66
      %p68 = scmp.ne.s32.totalorder %s56, %s57
      %p69 = scmp.eq.s32.totalorder %s26, 1
      %p70 = por %p68, %p69
      %p72 = scmp.ne.s32.totalorder %s57, %s71
      %p73 = scmp.eq.s32.totalorder %s26, 0
      %p74 = por %p72, %p73
      %s76 = sadd.s32 %s75, 1
      %p79 = scmp.eq.s32.totalorder %s20, 1
      %p80 = scmp.ne.s32.totalorder %s75, %s77
      %p81 = scmp.eq.s32.totalorder %s20, 0
      %p82 = por %p80, %p81
      %p83 = scmp.ne.s32.totalorder %s75, %s77
      %p84 = scmp.eq.s32.totalorder %s25, 1
      %p85 = por %p83, %p84
      %p86 = scmp.ne.s32.totalorder %s77, %s78
      %p87 = scmp.eq.s32.totalorder %s25, 0
      %p88 = por %p86, %p87
      %p89 = scmp.ne.s32.totalorder %s77, %s78
      %p90 = scmp.eq.s32.totalorder %s26, 1
      %p91 = por %p89, %p90
      %p93 = scmp.ne.s32.totalorder %s78, %s92
      %p94 = scmp.eq.s32.totalorder %s26, 0
      %p95 = por %p93, %p94
      %s97 = sadd.s32 %s96, 1
      %p100 = scmp.eq.s32.totalorder %s20, 1
      %p101 = scmp.ne.s32.totalorder %s96, %s98
      %p102 = scmp.eq.s32.totalorder %s20, 0
      %p103 = por %p101, %p102
      %p104 = scmp.ne.s32.totalorder %s96, %s98
      %p105 = scmp.eq.s32.totalorder %s25, 1
      %p106 = por %p104, %p105
      %p107 = scmp.ne.s32.totalorder %s98, %s99
      %p108 = scmp.eq.s32.totalorder %s25, 0
      %p109 = por %p107, %p108
      %p110 = scmp.ne.s32.totalorder %s98, %s99
      %p111 = scmp.eq.s32.totalorder %s26, 1
      %p112 = por %p110, %p111
      %p114 = scmp.ne.s32.totalorder %s99, %s113
      %p115 = scmp.eq.s32.totalorder %s26, 0
      %p116 = por %p114, %p115
      %s118 = sadd.s32 %s117, 1
      %p121 = scmp.eq.s32.totalorder %s20, 1
      %p122 = scmp.ne.s32.totalorder %s117, %s119
      %p123 = scmp.eq.s32.totalorder %s20, 0
      %p124 = por %p122, %p123
      %p125 = scmp.ne.s32.totalorder %s117, %s119
      %p126 = scmp.eq.s32.totalorder %s25, 1
      %p127 = por %p125, %p126
      %p128 = scmp.ne.s32.totalorder %s119, %s120
      %p129 = scmp.eq.s32.totalorder %s25, 0
      %p130 = por %p128, %p129
      %p131 = scmp.ne.s32.totalorder %s119, %s120
      %p132 = scmp.eq.s32.totalorder %s26, 1
      %p133 = por %p131, %p132
      %p135 = scmp.ne.s32.totalorder %s120, %s134
      %p136 = scmp.eq.s32.totalorder %s26, 0
      %p137 = por %p135, %p136
      %s139 = sadd.s32 %s138, 1
      %p142 = scmp.eq.s32.totalorder %s20, 1
      %p143 = scmp.ne.s32.totalorder %s138, %s140
      %p144 = scmp.eq.s32.totalorder %s20, 0
      %p145 = por %p143, %p144
      %p146 = scmp.ne.s32.totalorder %s138, %s140
      %p147 = scmp.eq.s32.totalorder %s25, 1
      %p148 = por %p146, %p147
      %p149 = scmp.ne.s32.totalorder %s140, %s141
      %p150 = scmp.eq.s32.totalorder %s25, 0
      %p151 = por %p149, %p150
      %p152 = scmp.ne.s32.totalorder %s140, %s141
      %p153 = scmp.eq.s32.totalorder %s26, 1
      %p154 = por %p152, %p153
      %p156 = scmp.ne.s32.totalorder %s141, %s155
      %p157 = scmp.eq.s32.totalorder %s26, 0
      %p158 = por %p156, %p157
      %s160 = sadd.s32 %s159, 1
      %p163 = scmp.eq.s32.totalorder %s20, 1
      %p164 = scmp.ne.s32.totalorder %s159, %s161
      %p165 = scmp.eq.s32.totalorder %s20, 0
      %p166 = por %p164, %p165
      %p167 = scmp.ne.s32.totalorder %s159, %s161
      %p168 = scmp.eq.s32.totalorder %s25, 1
      %p169 = por %p167, %p168
      %p170 = scmp.ne.s32.totalorder %s161, %s162
      %p171 = scmp.eq.s32.totalorder %s25, 0
      %p172 = por %p170, %p171
      %p173 = scmp.ne.s32.totalorder %s161, %s162
      %p174 = scmp.eq.s32.totalorder %s26, 1
      %p175 = por %p173, %p174
      %p177 = scmp.ne.s32.totalorder %s162, %s176
      %p178 = scmp.eq.s32.totalorder %s26, 0
      %p179 = por %p177, %p178
      %s181 = sadd.s32 %s180, 1
      %p184 = scmp.eq.s32.totalorder %s20, 1
      %p185 = scmp.ne.s32.totalorder %s180, %s182
      %p186 = scmp.eq.s32.totalorder %s20, 0
      %p187 = por %p185, %p186
      %p188 = scmp.ne.s32.totalorder %s180, %s182
      %p189 = scmp.eq.s32.totalorder %s25, 1
      %p190 = por %p188, %p189
      %p191 = scmp.ne.s32.totalorder %s182, %s183
      %p192 = scmp.eq.s32.totalorder %s25, 0
      %p193 = por %p191, %p192
      %p194 = scmp.ne.s32.totalorder %s182, %s183
      %p195 = scmp.eq.s32.totalorder %s26, 1
      %p196 = por %p194, %p195
      %p198 = scmp.ne.s32.totalorder %s183, %s197
      %p199 = scmp.eq.s32.totalorder %s26, 0
      %p200 = por %p198, %p199
      %s202 = sadd.s32 %s201, 1
      %p205 = scmp.eq.s32.totalorder %s20, 1
      %p206 = scmp.ne.s32.totalorder %s201, %s203
      %p207 = scmp.eq.s32.totalorder %s20, 0
      %p208 = por %p206, %p207
      %p209 = scmp.ne.s32.totalorder %s201, %s203
      %p210 = scmp.eq.s32.totalorder %s25, 1
      %p211 = por %p209, %p210
      %p212 = scmp.ne.s32.totalorder %s203, %s204
      %p213 = scmp.eq.s32.totalorder %s25, 0
      %p214 = por %p212, %p213
      %p215 = scmp.ne.s32.totalorder %s203, %s204
      %p216 = scmp.eq.s32.totalorder %s26, 1
      %p217 = por %p215, %p216
      %p219 = scmp.ne.s32.totalorder %s204, %s218
      %p220 = scmp.eq.s32.totalorder %s26, 0
      %p221 = por %p219, %p220
      %s222 = ssub.s32 %s20, %s27
      %p223 = scmp.eq.s32.totalorder %s222, 0
      %s225 = sadd.s32 %s224, 1
      %s226 = scalar_select %p223, %s224, %s225
      %p229 = pneg %p223
      %p230 = scmp.eq.s32.totalorder %s20, 1
      %p231 = por %p229, %p230
      %p232 = scmp.ne.s32.totalorder %s224, %s227
      %p233 = scmp.eq.s32.totalorder %s20, 0
      %p234 = por %p232, %p233
      %p235 = scmp.ne.s32.totalorder %s224, %s227
      %p236 = scmp.eq.s32.totalorder %s25, 1
      %p237 = por %p235, %p236
      %p238 = scmp.ne.s32.totalorder %s227, %s228
      %p239 = scmp.eq.s32.totalorder %s25, 0
      %p240 = por %p238, %p239
      %p241 = scmp.ne.s32.totalorder %s227, %s228
      %p242 = scmp.eq.s32.totalorder %s26, 1
      %p243 = por %p241, %p242
      %p245 = scmp.ne.s32.totalorder %s228, %s244
      %p246 = scmp.eq.s32.totalorder %s26, 0
      %p247 = por %p245, %p246
      %p248 = scmp.le.s32.totalorder 1, %s20
      %p249 = scmp.lt.s32.totalorder %s20, 3
      %p250 = pnand %p248, %p249
      %p251 = pneg %p250
      // Predicated region
      $region9: #{tpu_custom_call.1} parent=5 // pred_check
        _
      $region10: #{tpu_custom_call.1} parent=5 // pred_check_branch
        %253 = sbr.rel (%p250) target = $region12
      $region11: #{tpu_custom_call.1} parent=5 // pred_region
        %s254 = ssub.s32 %s20, 1
        // Predicated region
        $region13: #{tpu_custom_call.1} parent=11 // pred_check
          %p255 = pneg %p67
        $region14: #{tpu_custom_call.1} parent=11 // pred_check_branch
          %257 = sbr.rel (%p255) target = $region16
        $region15: #{tpu_custom_call.1} parent=11 // pred_region
          _
        $region16: #{tpu_custom_call.1} parent=11 // pred_fallthru
          _
        // Predicated region
        $region17: #{tpu_custom_call.1} parent=11 // pred_check
          %p258 = pneg %p88
        $region18: #{tpu_custom_call.1} parent=11 // pred_check_branch
          %260 = sbr.rel (%p258) target = $region20
        $region19: #{tpu_custom_call.1} parent=11 // pred_region
          _
        $region20: #{tpu_custom_call.1} parent=11 // pred_fallthru
          _
        // Predicated region
        $region21: #{tpu_custom_call.1} parent=11 // pred_check
          %p261 = pneg %p109
        $region22: #{tpu_custom_call.1} parent=11 // pred_check_branch
          %263 = sbr.rel (%p261) target = $region24
        $region23: #{tpu_custom_call.1} parent=11 // pred_region
          %265 = vsyncadd [#allocation3], 0
          %s266 = sshll.u32 %s3, 4
          %s267 = int_to_ptr.hbm [resolvable:$true] %s266
          %s268 = sshll.u32 [#allocation2], 4
          %s269 = int_to_ptr.vmem [resolvable:$true] %s268
          %274 = dma.hbm_to_vmem [thread:$0]  %s267, 14336, %s269, [#allocation3], 128, 128, 8
        $region24: #{tpu_custom_call.1} parent=11 // pred_fallthru
          _
        // Predicated region
        $region25: #{tpu_custom_call.1} parent=11 // pred_check
          %p275 = pneg %p130
        $region26: #{tpu_custom_call.1} parent=11 // pred_check_branch
          %277 = sbr.rel (%p275) target = $region28
        $region27: #{tpu_custom_call.1} parent=11 // pred_region
          _
        $region28: #{tpu_custom_call.1} parent=11 // pred_fallthru
          _
        // Predicated region
        $region29: #{tpu_custom_call.1} parent=11 // pred_check
          %p278 = pneg %p151
        $region30: #{tpu_custom_call.1} parent=11 // pred_check_branch
          %280 = sbr.rel (%p278) target = $region32
        $region31: #{tpu_custom_call.1} parent=11 // pred_region
          %282 = vsyncadd [#allocation6], 0
          %s283 = sshll.u32 %s5, 4
          %s284 = int_to_ptr.hbm [resolvable:$true] %s283
          %s285 = sshll.u32 [#allocation5], 4
          %s286 = int_to_ptr.vmem [resolvable:$true] %s285
          %291 = dma.hbm_to_vmem [thread:$0]  %s284, 14336, %s286, [#allocation6], 128, 128, 8
        $region32: #{tpu_custom_call.1} parent=11 // pred_fallthru
          _
        // Predicated region
        $region33: #{tpu_custom_call.1} parent=11 // pred_check
          %p292 = pneg %p172
        $region34: #{tpu_custom_call.1} parent=11 // pred_check_branch
          %294 = sbr.rel (%p292) target = $region36
        $region35: #{tpu_custom_call.1} parent=11 // pred_region
          _
        $region36: #{tpu_custom_call.1} parent=11 // pred_fallthru
          _
        // Predicated region
        $region37: #{tpu_custom_call.1} parent=11 // pred_check
          %p295 = pneg %p193
        $region38: #{tpu_custom_call.1} parent=11 // pred_check_branch
          %297 = sbr.rel (%p295) target = $region40
        $region39: #{tpu_custom_call.1} parent=11 // pred_region
          %299 = vsyncadd [#allocation6], 0
          %s300 = sshll.u32 %s7, 4
          %s301 = int_to_ptr.hbm [resolvable:$true] %s300
          %s302 = sshll.u32 [#allocation7], 4
          %s303 = int_to_ptr.vmem [resolvable:$true] %s302
          %308 = dma.hbm_to_vmem [thread:$0]  %s301, 2048, %s303, [#allocation6], 128, 128, 8
        $region40: #{tpu_custom_call.1} parent=11 // pred_fallthru
          _
        // Predicated region
        $region41: #{tpu_custom_call.1} parent=11 // pred_check
          %p309 = pneg %p214
        $region42: #{tpu_custom_call.1} parent=11 // pred_check_branch
          %311 = sbr.rel (%p309) target = $region44
        $region43: #{tpu_custom_call.1} parent=11 // pred_region
          _
        $region44: #{tpu_custom_call.1} parent=11 // pred_fallthru
          _
      $region12: #{tpu_custom_call.1} parent=5 // pred_fallthru
        _
      %p312 = scmp.lt.s32.totalorder %s20, 2
      // Predicated region
      $region45: #{tpu_custom_call.1} parent=5 // pred_check
        %p313 = pneg %p312
      $region46: #{tpu_custom_call.1} parent=5 // pred_check_branch
        %315 = sbr.rel (%p313) target = $region48
      $region47: #{tpu_custom_call.1} parent=5 // pred_region
        // Predicated region
        $region49: #{tpu_custom_call.1} parent=47 // pred_check
          %p316 = pneg %p40
        $region50: #{tpu_custom_call.1} parent=47 // pred_check_branch
          %318 = sbr.rel (%p316) target = $region52
        $region51: #{tpu_custom_call.1} parent=47 // pred_region
          %s319 = smul.u32 2, %s20
          %p320 = scmp.lt.s32.totalorder %s319, 3
          %s321 = scalar_select %p320, %s319, 3
          %s322 = smul.addr %s321, 8
          %s323 = scalar_lea.vmem %s0, %s322
          %s324 = smul.u32 2, %s20
        $region52: #{tpu_custom_call.1} parent=47 // pred_fallthru
          _
      $region48: #{tpu_custom_call.1} parent=5 // pred_fallthru
        _
      %p325 = scmp.le.s32.totalorder 1, %s20
      %p326 = scmp.lt.s32.totalorder %s20, 3
      %p327 = pnand %p325, %p326
      %p328 = pneg %p327
      // Predicated region
      $region53: #{tpu_custom_call.1} parent=5 // pred_check
        _
      $region54: #{tpu_custom_call.1} parent=5 // pred_check_branch
        %330 = sbr.rel (%p327) target = $region56
      $region55: #{tpu_custom_call.1} parent=5 // pred_region
        %s331 = ssub.s32 %s20, 1
        // Predicated region
        $region57: #{tpu_custom_call.1} parent=55 // pred_check
          %p332 = pneg %p109
        $region58: #{tpu_custom_call.1} parent=55 // pred_check_branch
          %334 = sbr.rel (%p332) target = $region60
        $region59: #{tpu_custom_call.1} parent=55 // pred_region
          %336 = dma.done [#allocation3], 14336
        $region60: #{tpu_custom_call.1} parent=55 // pred_fallthru
          _
        // Predicated region
        $region61: #{tpu_custom_call.1} parent=55 // pred_check
          %p337 = pneg %p151
        $region62: #{tpu_custom_call.1} parent=55 // pred_check_branch
          %339 = sbr.rel (%p337) target = $region64
        $region63: #{tpu_custom_call.1} parent=55 // pred_region
          %341 = dma.done [#allocation6], 14336
        $region64: #{tpu_custom_call.1} parent=55 // pred_fallthru
          _
        // Predicated region
        $region65: #{tpu_custom_call.1} parent=55 // pred_check
          %p342 = pneg %p193
        $region66: #{tpu_custom_call.1} parent=55 // pred_check_branch
          %344 = sbr.rel (%p342) target = $region68
        $region67: #{tpu_custom_call.1} parent=55 // pred_region
          %346 = dma.done [#allocation6], 2048
        $region68: #{tpu_custom_call.1} parent=55 // pred_fallthru
          _
        %s347 = smul.u32 2, %s25
        %p348 = scmp.lt.s32.totalorder %s347, 3
        %s349 = scalar_select %p348, %s347, 3
        %s350 = smul.addr %s349, 8
        %s351 = scalar_lea.vmem %s0, %s350
        %p352 = pneg %p46
        %p353 = pneg %p43
        %p354 = pneg %p67
        %p355 = pneg %p64
        %p356 = pneg %p88
        %p357 = pneg %p85
        %p358 = pneg %p109
        %p359 = pneg %p106
        %p360 = pneg %p130
        %p361 = pneg %p127
        %p362 = pneg %p151
        %p363 = pneg %p148
        %p364 = pneg %p172
        %p365 = pneg %p169
        %p366 = pneg %p193
        %p367 = pneg %p190
        %p368 = pneg %p214
        %p369 = pneg %p211
        %p370 = pneg %p240
        %p371 = pneg %p237
        %s372 = sand.u32 %s227, 1
        %s373 = scalar_lea.sflag [#allocation4], %s372
        %s374 = sand.u32 %s227, 1
        %s375 = smul.addr %s374, 8
        %s376 = scalar_lea.vmem [#allocation8], %s375
        %s377 = smul.u32 2, %s25
        %p378 = scmp.lt.s32.totalorder %s377, 3
        %s379 = scalar_select %p378, %s377, 3
        %s380 = smul.addr %s379, 8
        %s381 = scalar_lea.vmem %s0, %s380
        %s382 = smul.u32 2, %s25
        %v383 = vld [vmem:[%s381] sm:$0xff]
        %v384 = vld [vmem:[%s381 + $0x8] sm:$0xff]
        %v385 = vld [vmem:[%s1] sm:$0xf]
        %v386 = vld [vmem:[%s2] sm:$0x1]
        %v388 = vperm.slane %v386, 0
        %vm390 = vcmask 31744
        %v392 = vsel %vm390, %v383, 0
        %v395 = vsel %vm390, %v384, 0
        %vm397 = vcmask 1043456
        %v399 = vsel %vm397, %v385, 0
        %401 = vmatpush.msra.mxu0 0.0
        %402 = vmatpush.msra.mxu0 0.0
        %403 = vmatpush.msra.mxu0 0.0
        %404 = vmatpush.msra.mxu0 0.0
        %405 = vmatpush.msra.mxu0 0.0
        %406 = vmatpush.msra.mxu0 0.0
        %407 = vmatpush.msra.mxu0 0.0
        %408 = vmatpush.msra.mxu0 0.0
        %409 = vmatpush.msra.mxu0 0.0
        %410 = vmatpush.msra.mxu0 0.0
        %411 = vmatpush.msra.mxu0 0.0
        %412 = vmatpush.msra.mxu0 0.0
        %413 = vmatpush.msra.mxu0 0.0
        %414 = vmatpush.msra.mxu0 0.0
        %415 = vmatpush.msra.mxu0 0.0
        %416 = vmatpush.msra.mxu0 %v399
        %417 = vmatmul.f32.gmra.mxu0 %v392
        %v418 = vpop.f32.mrf.mxu0
        %v419 = vadd.f32 %v388, %v418
        %420 = vmatmul.f32.gmra.mxu0 %v395
        %v421 = vpop.f32.mrf.mxu0
        %v422 = vadd.f32 %v388, %v421
        %423 = vdwg.mxu0
        %v424 = vmax.f32 %v419, 0.0
        %v425 = vmax.f32 %v422, 0.0
        %v426 = vld [vmem:[#allocation2] sm:$0xff]
        %v427 = vld [vmem:[#allocation2 + $0x8] sm:$0xff]
        %v428 = vld [vmem:[#allocation2 + $0x10] sm:$0xff]
        %v429 = vld [vmem:[#allocation2 + $0x18] sm:$0xff]
        %v430 = vld [vmem:[#allocation2 + $0x20] sm:$0xff]
        %v431 = vld [vmem:[#allocation2 + $0x28] sm:$0xff]
        %v432 = vld [vmem:[#allocation2 + $0x30] sm:$0xff]
        %v433 = vld [vmem:[#allocation2 + $0x38] sm:$0xff]
        %v434 = vld [vmem:[#allocation2 + $0x40] sm:$0xff]
        %v435 = vld [vmem:[#allocation2 + $0x48] sm:$0xff]
        %v436 = vld [vmem:[#allocation2 + $0x50] sm:$0xff]
        %v437 = vld [vmem:[#allocation2 + $0x58] sm:$0xff]
        %v438 = vld [vmem:[#allocation2 + $0x60] sm:$0xff]
        %v439 = vld [vmem:[#allocation2 + $0x68] sm:$0xff]
        %v440 = vld [vmem:[#allocation2 + $0x70] sm:$0xff]
        %v441 = vld [vmem:[#allocation2 + $0x78] sm:$0xff]
        %v442 = vld [vmem:[%s4] sm:$0x1]
        %v444 = vperm.slane %v442, 0
        %446 = vmatpush.msra.mxu0 %v441
        %447 = vmatpush.msra.mxu0 %v440
        %448 = vmatpush.msra.mxu0 %v439
        %449 = vmatpush.msra.mxu0 %v438
        %450 = vmatpush.msra.mxu0 %v437
        %451 = vmatpush.msra.mxu0 %v436
        %452 = vmatpush.msra.mxu0 %v435
        %453 = vmatpush.msra.mxu0 %v434
        %454 = vmatpush.msra.mxu0 %v433
        %455 = vmatpush.msra.mxu0 %v432
        %456 = vmatpush.msra.mxu0 %v431
        %457 = vmatpush.msra.mxu0 %v430
        %458 = vmatpush.msra.mxu0 %v429
        %459 = vmatpush.msra.mxu0 %v428
        %460 = vmatpush.msra.mxu0 %v427
        %461 = vmatpush.msra.mxu0 %v426
        %462 = vmatmul.f32.gmra.mxu0 %v424
        %v463 = vpop.f32.mrf.mxu0
        %v464 = vadd.f32 %v444, %v463
        %465 = vmatmul.f32.gmra.mxu0 %v425
        %v466 = vpop.f32.mrf.mxu0
        %v467 = vadd.f32 %v444, %v466
        %468 = vdwg.mxu0
        %v469 = vmax.f32 %v464, 0.0
        %v470 = vmax.f32 %v467, 0.0
        %v471 = vld [vmem:[#allocation5] sm:$0xff]
        %v472 = vld [vmem:[#allocation5 + $0x8] sm:$0xff]
        %v473 = vld [vmem:[#allocation5 + $0x10] sm:$0xff]
        %v474 = vld [vmem:[#allocation5 + $0x18] sm:$0xff]
        %v475 = vld [vmem:[#allocation5 + $0x20] sm:$0xff]
        %v476 = vld [vmem:[#allocation5 + $0x28] sm:$0xff]
        %v477 = vld [vmem:[#allocation5 + $0x30] sm:$0xff]
        %v478 = vld [vmem:[#allocation5 + $0x38] sm:$0xff]
        %v479 = vld [vmem:[#allocation5 + $0x40] sm:$0xff]
        %v480 = vld [vmem:[#allocation5 + $0x48] sm:$0xff]
        %v481 = vld [vmem:[#allocation5 + $0x50] sm:$0xff]
        %v482 = vld [vmem:[#allocation5 + $0x58] sm:$0xff]
        %v483 = vld [vmem:[#allocation5 + $0x60] sm:$0xff]
        %v484 = vld [vmem:[#allocation5 + $0x68] sm:$0xff]
        %v485 = vld [vmem:[#allocation5 + $0x70] sm:$0xff]
        %v486 = vld [vmem:[#allocation5 + $0x78] sm:$0xff]
        %v487 = vld [vmem:[%s6] sm:$0x1]
        %v489 = vperm.slane %v487, 0
        %491 = vmatpush.msra.mxu0 %v486
        %492 = vmatpush.msra.mxu0 %v485
        %493 = vmatpush.msra.mxu0 %v484
        %494 = vmatpush.msra.mxu0 %v483
        %495 = vmatpush.msra.mxu0 %v482
        %496 = vmatpush.msra.mxu0 %v481
        %497 = vmatpush.msra.mxu0 %v480
        %498 = vmatpush.msra.mxu0 %v479
        %499 = vmatpush.msra.mxu0 %v478
        %500 = vmatpush.msra.mxu0 %v477
        %501 = vmatpush.msra.mxu0 %v476
        %502 = vmatpush.msra.mxu0 %v475
        %503 = vmatpush.msra.mxu0 %v474
        %504 = vmatpush.msra.mxu0 %v473
        %505 = vmatpush.msra.mxu0 %v472
        %506 = vmatpush.msra.mxu0 %v471
        %507 = vmatmul.f32.gmra.mxu0 %v469
        %v508 = vpop.f32.mrf.mxu0
        %v509 = vadd.f32 %v489, %v508
        %510 = vmatmul.f32.gmra.mxu0 %v470
        %v511 = vpop.f32.mrf.mxu0
        %v512 = vadd.f32 %v489, %v511
        %513 = vdwg.mxu0
        %v514 = vadd.f32 %v509, %v424
        %v515 = vadd.f32 %v512, %v425
        %v516 = vmax.f32 %v514, 0.0
        %v517 = vmax.f32 %v515, 0.0
        %s518 = scalar_lea.vmem [#allocation2], 128
        %v519 = vld [vmem:[%s518] sm:$0xff]
        %v520 = vld [vmem:[%s518 + $0x8] sm:$0xff]
        %v521 = vld [vmem:[%s518 + $0x10] sm:$0xff]
        %v522 = vld [vmem:[%s518 + $0x18] sm:$0xff]
        %v523 = vld [vmem:[%s518 + $0x20] sm:$0xff]
        %v524 = vld [vmem:[%s518 + $0x28] sm:$0xff]
        %v525 = vld [vmem:[%s518 + $0x30] sm:$0xff]
        %v526 = vld [vmem:[%s518 + $0x38] sm:$0xff]
        %v527 = vld [vmem:[%s518 + $0x40] sm:$0xff]
        %v528 = vld [vmem:[%s518 + $0x48] sm:$0xff]
        %v529 = vld [vmem:[%s518 + $0x50] sm:$0xff]
        %v530 = vld [vmem:[%s518 + $0x58] sm:$0xff]
        %v531 = vld [vmem:[%s518 + $0x60] sm:$0xff]
        %v532 = vld [vmem:[%s518 + $0x68] sm:$0xff]
        %v533 = vld [vmem:[%s518 + $0x70] sm:$0xff]
        %v534 = vld [vmem:[%s518 + $0x78] sm:$0xff]
        %s535 = scalar_lea.vmem %s4, 1
        %v536 = vld [vmem:[%s535] sm:$0x1]
        %v538 = vperm.slane %v536, 0
        %540 = vmatpush.msra.mxu0 %v534
        %541 = vmatpush.msra.mxu0 %v533
        %542 = vmatpush.msra.mxu0 %v532
        %543 = vmatpush.msra.mxu0 %v531
        %544 = vmatpush.msra.mxu0 %v530
        %545 = vmatpush.msra.mxu0 %v529
        %546 = vmatpush.msra.mxu0 %v528
        %547 = vmatpush.msra.mxu0 %v527
        %548 = vmatpush.msra.mxu0 %v526
        %549 = vmatpush.msra.mxu0 %v525
        %550 = vmatpush.msra.mxu0 %v524
        %551 = vmatpush.msra.mxu0 %v523
        %552 = vmatpush.msra.mxu0 %v522
        %553 = vmatpush.msra.mxu0 %v521
        %554 = vmatpush.msra.mxu0 %v520
        %555 = vmatpush.msra.mxu0 %v519
        %556 = vmatmul.f32.gmra.mxu0 %v516
        %v557 = vpop.f32.mrf.mxu0
        %v558 = vadd.f32 %v538, %v557
        %559 = vmatmul.f32.gmra.mxu0 %v517
        %v560 = vpop.f32.mrf.mxu0
        %v561 = vadd.f32 %v538, %v560
        %562 = vdwg.mxu0
        %v563 = vmax.f32 %v558, 0.0
        %v564 = vmax.f32 %v561, 0.0
        %s565 = scalar_lea.vmem [#allocation5], 128
        %v566 = vld [vmem:[%s565] sm:$0xff]
        %v567 = vld [vmem:[%s565 + $0x8] sm:$0xff]
        %v568 = vld [vmem:[%s565 + $0x10] sm:$0xff]
        %v569 = vld [vmem:[%s565 + $0x18] sm:$0xff]
        %v570 = vld [vmem:[%s565 + $0x20] sm:$0xff]
        %v571 = vld [vmem:[%s565 + $0x28] sm:$0xff]
        %v572 = vld [vmem:[%s565 + $0x30] sm:$0xff]
        %v573 = vld [vmem:[%s565 + $0x38] sm:$0xff]
        %v574 = vld [vmem:[%s565 + $0x40] sm:$0xff]
        %v575 = vld [vmem:[%s565 + $0x48] sm:$0xff]
        %v576 = vld [vmem:[%s565 + $0x50] sm:$0xff]
        %v577 = vld [vmem:[%s565 + $0x58] sm:$0xff]
        %v578 = vld [vmem:[%s565 + $0x60] sm:$0xff]
        %v579 = vld [vmem:[%s565 + $0x68] sm:$0xff]
        %v580 = vld [vmem:[%s565 + $0x70] sm:$0xff]
        %v581 = vld [vmem:[%s565 + $0x78] sm:$0xff]
        %s582 = scalar_lea.vmem %s6, 1
        %v583 = vld [vmem:[%s582] sm:$0x1]
        %v585 = vperm.slane %v583, 0
        %587 = vmatpush.msra.mxu0 %v581
        %588 = vmatpush.msra.mxu0 %v580
        %589 = vmatpush.msra.mxu0 %v579
        %590 = vmatpush.msra.mxu0 %v578
        %591 = vmatpush.msra.mxu0 %v577
        %592 = vmatpush.msra.mxu0 %v576
        %593 = vmatpush.msra.mxu0 %v575
        %594 = vmatpush.msra.mxu0 %v574
        %595 = vmatpush.msra.mxu0 %v573
        %596 = vmatpush.msra.mxu0 %v572
        %597 = vmatpush.msra.mxu0 %v571
        %598 = vmatpush.msra.mxu0 %v570
        %599 = vmatpush.msra.mxu0 %v569
        %600 = vmatpush.msra.mxu0 %v568
        %601 = vmatpush.msra.mxu0 %v567
        %602 = vmatpush.msra.mxu0 %v566
        %603 = vmatmul.f32.gmra.mxu0 %v563
        %v604 = vpop.f32.mrf.mxu0
        %v605 = vadd.f32 %v585, %v604
        %606 = vmatmul.f32.gmra.mxu0 %v564
        %v607 = vpop.f32.mrf.mxu0
        %v608 = vadd.f32 %v585, %v607
        %609 = vdwg.mxu0
        %v610 = vadd.f32 %v605, %v516
        %v611 = vadd.f32 %v608, %v517
        %v612 = vmax.f32 %v610, 0.0
        %v613 = vmax.f32 %v611, 0.0
        %s614 = scalar_lea.vmem [#allocation2], 256
        %v615 = vld [vmem:[%s614] sm:$0xff]
        %v616 = vld [vmem:[%s614 + $0x8] sm:$0xff]
        %v617 = vld [vmem:[%s614 + $0x10] sm:$0xff]
        %v618 = vld [vmem:[%s614 + $0x18] sm:$0xff]
        %v619 = vld [vmem:[%s614 + $0x20] sm:$0xff]
        %v620 = vld [vmem:[%s614 + $0x28] sm:$0xff]
        %v621 = vld [vmem:[%s614 + $0x30] sm:$0xff]
        %v622 = vld [vmem:[%s614 + $0x38] sm:$0xff]
        %v623 = vld [vmem:[%s614 + $0x40] sm:$0xff]
        %v624 = vld [vmem:[%s614 + $0x48] sm:$0xff]
        %v625 = vld [vmem:[%s614 + $0x50] sm:$0xff]
        %v626 = vld [vmem:[%s614 + $0x58] sm:$0xff]
        %v627 = vld [vmem:[%s614 + $0x60] sm:$0xff]
        %v628 = vld [vmem:[%s614 + $0x68] sm:$0xff]
        %v629 = vld [vmem:[%s614 + $0x70] sm:$0xff]
        %v630 = vld [vmem:[%s614 + $0x78] sm:$0xff]
        %s631 = scalar_lea.vmem %s4, 2
        %v632 = vld [vmem:[%s631] sm:$0x1]
        %v634 = vperm.slane %v632, 0
        %636 = vmatpush.msra.mxu0 %v630
        %637 = vmatpush.msra.mxu0 %v629
        %638 = vmatpush.msra.mxu0 %v628
        %639 = vmatpush.msra.mxu0 %v627
        %640 = vmatpush.msra.mxu0 %v626
        %641 = vmatpush.msra.mxu0 %v625
        %642 = vmatpush.msra.mxu0 %v624
        %643 = vmatpush.msra.mxu0 %v623
        %644 = vmatpush.msra.mxu0 %v622
        %645 = vmatpush.msra.mxu0 %v621
        %646 = vmatpush.msra.mxu0 %v620
        %647 = vmatpush.msra.mxu0 %v619
        %648 = vmatpush.msra.mxu0 %v618
        %649 = vmatpush.msra.mxu0 %v617
        %650 = vmatpush.msra.mxu0 %v616
        %651 = vmatpush.msra.mxu0 %v615
        %652 = vmatmul.f32.gmra.mxu0 %v612
        %v653 = vpop.f32.mrf.mxu0
        %v654 = vadd.f32 %v634, %v653
        %655 = vmatmul.f32.gmra.mxu0 %v613
        %v656 = vpop.f32.mrf.mxu0
        %v657 = vadd.f32 %v634, %v656
        %658 = vdwg.mxu0
        %v659 = vmax.f32 %v654, 0.0
        %v660 = vmax.f32 %v657, 0.0
        %s661 = scalar_lea.vmem [#allocation5], 256
        %v662 = vld [vmem:[%s661] sm:$0xff]
        %v663 = vld [vmem:[%s661 + $0x8] sm:$0xff]
        %v664 = vld [vmem:[%s661 + $0x10] sm:$0xff]
        %v665 = vld [vmem:[%s661 + $0x18] sm:$0xff]
        %v666 = vld [vmem:[%s661 + $0x20] sm:$0xff]
        %v667 = vld [vmem:[%s661 + $0x28] sm:$0xff]
        %v668 = vld [vmem:[%s661 + $0x30] sm:$0xff]
        %v669 = vld [vmem:[%s661 + $0x38] sm:$0xff]
        %v670 = vld [vmem:[%s661 + $0x40] sm:$0xff]
        %v671 = vld [vmem:[%s661 + $0x48] sm:$0xff]
        %v672 = vld [vmem:[%s661 + $0x50] sm:$0xff]
        %v673 = vld [vmem:[%s661 + $0x58] sm:$0xff]
        %v674 = vld [vmem:[%s661 + $0x60] sm:$0xff]
        %v675 = vld [vmem:[%s661 + $0x68] sm:$0xff]
        %v676 = vld [vmem:[%s661 + $0x70] sm:$0xff]
        %v677 = vld [vmem:[%s661 + $0x78] sm:$0xff]
        %s678 = scalar_lea.vmem %s6, 2
        %v679 = vld [vmem:[%s678] sm:$0x1]
        %v681 = vperm.slane %v679, 0
        %683 = vmatpush.msra.mxu0 %v677
        %684 = vmatpush.msra.mxu0 %v676
        %685 = vmatpush.msra.mxu0 %v675
        %686 = vmatpush.msra.mxu0 %v674
        %687 = vmatpush.msra.mxu0 %v673
        %688 = vmatpush.msra.mxu0 %v672
        %689 = vmatpush.msra.mxu0 %v671
        %690 = vmatpush.msra.mxu0 %v670
        %691 = vmatpush.msra.mxu0 %v669
        %692 = vmatpush.msra.mxu0 %v668
        %693 = vmatpush.msra.mxu0 %v667
        %694 = vmatpush.msra.mxu0 %v666
        %695 = vmatpush.msra.mxu0 %v665
        %696 = vmatpush.msra.mxu0 %v664
        %697 = vmatpush.msra.mxu0 %v663
        %698 = vmatpush.msra.mxu0 %v662
        %699 = vmatmul.f32.gmra.mxu0 %v659
        %v700 = vpop.f32.mrf.mxu0
        %v701 = vadd.f32 %v681, %v700
        %702 = vmatmul.f32.gmra.mxu0 %v660
        %v703 = vpop.f32.mrf.mxu0
        %704 = vdwg.mxu0
        %v705 = vadd.f32 %v701, %v612
        %v706 = vmax.f32 %v705, 0.0
        %v707 = vld [vmem:[#allocation7] sm:$0xff]
        %v708 = vld [vmem:[#allocation7 + $0x8] sm:$0xff]
        %v709 = vld [vmem:[#allocation7 + $0x10] sm:$0xff]
        %v710 = vld [vmem:[#allocation7 + $0x18] sm:$0xff]
        %v711 = vld [vmem:[#allocation7 + $0x20] sm:$0xff]
        %v712 = vld [vmem:[#allocation7 + $0x28] sm:$0xff]
        %v713 = vld [vmem:[#allocation7 + $0x30] sm:$0xff]
        %v714 = vld [vmem:[#allocation7 + $0x38] sm:$0xff]
        %v715 = vld [vmem:[#allocation7 + $0x40] sm:$0xff]
        %v716 = vld [vmem:[#allocation7 + $0x48] sm:$0xff]
        %v717 = vld [vmem:[#allocation7 + $0x50] sm:$0xff]
        %v718 = vld [vmem:[#allocation7 + $0x58] sm:$0xff]
        %v719 = vld [vmem:[#allocation7 + $0x60] sm:$0xff]
        %v720 = vld [vmem:[#allocation7 + $0x68] sm:$0xff]
        %v721 = vld [vmem:[#allocation7 + $0x70] sm:$0xff]
        %v722 = vld [vmem:[#allocation7 + $0x78] sm:$0xff]
        %v723 = vld [vmem:[%s8] sm:$0x1]
        %v725 = vperm.slane %v723, 0
        %727 = vmatpush.msra.mxu0 %v722
        %728 = vmatpush.msra.mxu0 %v721
        %729 = vmatpush.msra.mxu0 %v720
        %730 = vmatpush.msra.mxu0 %v719
        %731 = vmatpush.msra.mxu0 %v718
        %732 = vmatpush.msra.mxu0 %v717
        %733 = vmatpush.msra.mxu0 %v716
        %734 = vmatpush.msra.mxu0 %v715
        %735 = vmatpush.msra.mxu0 %v714
        %736 = vmatpush.msra.mxu0 %v713
        %737 = vmatpush.msra.mxu0 %v712
        %738 = vmatpush.msra.mxu0 %v711
        %739 = vmatpush.msra.mxu0 %v710
        %740 = vmatpush.msra.mxu0 %v709
        %741 = vmatpush.msra.mxu0 %v708
        %742 = vmatpush.msra.mxu0 %v707
        %743 = vmatmul.f32.gmra.mxu0 %v706
        %v744 = vpop.f32.mrf.mxu0
        %v745 = vadd.f32 %v725, %v744
        %746 = vdwg.mxu0
        %s747 = scalar_lea.vmem [#allocation2], 384
        %v748 = vld [vmem:[%s747] sm:$0xff]
        %v749 = vld [vmem:[%s747 + $0x8] sm:$0xff]
        %v750 = vld [vmem:[%s747 + $0x10] sm:$0xff]
        %v751 = vld [vmem:[%s747 + $0x18] sm:$0xff]
        %v752 = vld [vmem:[%s747 + $0x20] sm:$0xff]
        %v753 = vld [vmem:[%s747 + $0x28] sm:$0xff]
        %v754 = vld [vmem:[%s747 + $0x30] sm:$0xff]
        %v755 = vld [vmem:[%s747 + $0x38] sm:$0xff]
        %v756 = vld [vmem:[%s747 + $0x40] sm:$0xff]
        %v757 = vld [vmem:[%s747 + $0x48] sm:$0xff]
        %v758 = vld [vmem:[%s747 + $0x50] sm:$0xff]
        %v759 = vld [vmem:[%s747 + $0x58] sm:$0xff]
        %v760 = vld [vmem:[%s747 + $0x60] sm:$0xff]
        %v761 = vld [vmem:[%s747 + $0x68] sm:$0xff]
        %v762 = vld [vmem:[%s747 + $0x70] sm:$0xff]
        %v763 = vld [vmem:[%s747 + $0x78] sm:$0xff]
        %s764 = scalar_lea.vmem %s4, 3
        %v765 = vld [vmem:[%s764] sm:$0x1]
        %v767 = vperm.slane %v765, 0
        %769 = vmatpush.msra.mxu0 %v763
        %770 = vmatpush.msra.mxu0 %v762
        %771 = vmatpush.msra.mxu0 %v761
        %772 = vmatpush.msra.mxu0 %v760
        %773 = vmatpush.msra.mxu0 %v759
        %774 = vmatpush.msra.mxu0 %v758
        %775 = vmatpush.msra.mxu0 %v757
        %776 = vmatpush.msra.mxu0 %v756
        %777 = vmatpush.msra.mxu0 %v755
        %778 = vmatpush.msra.mxu0 %v754
        %779 = vmatpush.msra.mxu0 %v753
        %780 = vmatpush.msra.mxu0 %v752
        %781 = vmatpush.msra.mxu0 %v751
        %782 = vmatpush.msra.mxu0 %v750
        %783 = vmatpush.msra.mxu0 %v749
        %784 = vmatpush.msra.mxu0 %v748
        %785 = vmatmul.f32.gmra.mxu0 %v706
        %v786 = vpop.f32.mrf.mxu0
        %v787 = vadd.f32 %v767, %v786
        %788 = vdwg.mxu0
        %v789 = vmax.f32 %v787, 0.0
        %s790 = scalar_lea.vmem [#allocation5], 384
        %v791 = vld [vmem:[%s790] sm:$0xff]
        %v792 = vld [vmem:[%s790 + $0x8] sm:$0xff]
        %v793 = vld [vmem:[%s790 + $0x10] sm:$0xff]
        %v794 = vld [vmem:[%s790 + $0x18] sm:$0xff]
        %v795 = vld [vmem:[%s790 + $0x20] sm:$0xff]
        %v796 = vld [vmem:[%s790 + $0x28] sm:$0xff]
        %v797 = vld [vmem:[%s790 + $0x30] sm:$0xff]
        %v798 = vld [vmem:[%s790 + $0x38] sm:$0xff]
        %v799 = vld [vmem:[%s790 + $0x40] sm:$0xff]
        %v800 = vld [vmem:[%s790 + $0x48] sm:$0xff]
        %v801 = vld [vmem:[%s790 + $0x50] sm:$0xff]
        %v802 = vld [vmem:[%s790 + $0x58] sm:$0xff]
        %v803 = vld [vmem:[%s790 + $0x60] sm:$0xff]
        %v804 = vld [vmem:[%s790 + $0x68] sm:$0xff]
        %v805 = vld [vmem:[%s790 + $0x70] sm:$0xff]
        %v806 = vld [vmem:[%s790 + $0x78] sm:$0xff]
        %s807 = scalar_lea.vmem %s6, 3
        %v808 = vld [vmem:[%s807] sm:$0x1]
        %v810 = vperm.slane %v808, 0
        %812 = vmatpush.msra.mxu0 %v806
        %813 = vmatpush.msra.mxu0 %v805
        %814 = vmatpush.msra.mxu0 %v804
        %815 = vmatpush.msra.mxu0 %v803
        %816 = vmatpush.msra.mxu0 %v802
        %817 = vmatpush.msra.mxu0 %v801
        %818 = vmatpush.msra.mxu0 %v800
        %819 = vmatpush.msra.mxu0 %v799
        %820 = vmatpush.msra.mxu0 %v798
        %821 = vmatpush.msra.mxu0 %v797
        %822 = vmatpush.msra.mxu0 %v796
        %823 = vmatpush.msra.mxu0 %v795
        %824 = vmatpush.msra.mxu0 %v794
        %825 = vmatpush.msra.mxu0 %v793
        %826 = vmatpush.msra.mxu0 %v792
        %827 = vmatpush.msra.mxu0 %v791
        %828 = vmatmul.f32.gmra.mxu0 %v789
        %v829 = vpop.f32.mrf.mxu0
        %v830 = vadd.f32 %v810, %v829
        %831 = vdwg.mxu0
        %v832 = vadd.f32 %v830, %v745
        %v833 = vmax.f32 %v832, 0.0
        %s834 = scalar_lea.vmem [#allocation2], 512
        %v835 = vld [vmem:[%s834] sm:$0xff]
        %v836 = vld [vmem:[%s834 + $0x8] sm:$0xff]
        %v837 = vld [vmem:[%s834 + $0x10] sm:$0xff]
        %v838 = vld [vmem:[%s834 + $0x18] sm:$0xff]
        %v839 = vld [vmem:[%s834 + $0x20] sm:$0xff]
        %v840 = vld [vmem:[%s834 + $0x28] sm:$0xff]
        %v841 = vld [vmem:[%s834 + $0x30] sm:$0xff]
        %v842 = vld [vmem:[%s834 + $0x38] sm:$0xff]
        %v843 = vld [vmem:[%s834 + $0x40] sm:$0xff]
        %v844 = vld [vmem:[%s834 + $0x48] sm:$0xff]
        %v845 = vld [vmem:[%s834 + $0x50] sm:$0xff]
        %v846 = vld [vmem:[%s834 + $0x58] sm:$0xff]
        %v847 = vld [vmem:[%s834 + $0x60] sm:$0xff]
        %v848 = vld [vmem:[%s834 + $0x68] sm:$0xff]
        %v849 = vld [vmem:[%s834 + $0x70] sm:$0xff]
        %v850 = vld [vmem:[%s834 + $0x78] sm:$0xff]
        %s851 = scalar_lea.vmem %s4, 4
        %v852 = vld [vmem:[%s851] sm:$0x1]
        %v854 = vperm.slane %v852, 0
        %856 = vmatpush.msra.mxu0 %v850
        %857 = vmatpush.msra.mxu0 %v849
        %858 = vmatpush.msra.mxu0 %v848
        %859 = vmatpush.msra.mxu0 %v847
        %860 = vmatpush.msra.mxu0 %v846
        %861 = vmatpush.msra.mxu0 %v845
        %862 = vmatpush.msra.mxu0 %v844
        %863 = vmatpush.msra.mxu0 %v843
        %864 = vmatpush.msra.mxu0 %v842
        %865 = vmatpush.msra.mxu0 %v841
        %866 = vmatpush.msra.mxu0 %v840
        %867 = vmatpush.msra.mxu0 %v839
        %868 = vmatpush.msra.mxu0 %v838
        %869 = vmatpush.msra.mxu0 %v837
        %870 = vmatpush.msra.mxu0 %v836
        %871 = vmatpush.msra.mxu0 %v835
        %872 = vmatmul.f32.gmra.mxu0 %v833
        %v873 = vpop.f32.mrf.mxu0
        %v874 = vadd.f32 %v854, %v873
        %875 = vdwg.mxu0
        %v876 = vmax.f32 %v874, 0.0
        %s877 = scalar_lea.vmem [#allocation5], 512
        %v878 = vld [vmem:[%s877] sm:$0xff]
        %v879 = vld [vmem:[%s877 + $0x8] sm:$0xff]
        %v880 = vld [vmem:[%s877 + $0x10] sm:$0xff]
        %v881 = vld [vmem:[%s877 + $0x18] sm:$0xff]
        %v882 = vld [vmem:[%s877 + $0x20] sm:$0xff]
        %v883 = vld [vmem:[%s877 + $0x28] sm:$0xff]
        %v884 = vld [vmem:[%s877 + $0x30] sm:$0xff]
        %v885 = vld [vmem:[%s877 + $0x38] sm:$0xff]
        %v886 = vld [vmem:[%s877 + $0x40] sm:$0xff]
        %v887 = vld [vmem:[%s877 + $0x48] sm:$0xff]
        %v888 = vld [vmem:[%s877 + $0x50] sm:$0xff]
        %v889 = vld [vmem:[%s877 + $0x58] sm:$0xff]
        %v890 = vld [vmem:[%s877 + $0x60] sm:$0xff]
        %v891 = vld [vmem:[%s877 + $0x68] sm:$0xff]
        %v892 = vld [vmem:[%s877 + $0x70] sm:$0xff]
        %v893 = vld [vmem:[%s877 + $0x78] sm:$0xff]
        %s894 = scalar_lea.vmem %s6, 4
        %v895 = vld [vmem:[%s894] sm:$0x1]
        %v897 = vperm.slane %v895, 0
        %899 = vmatpush.msra.mxu0 %v893
        %900 = vmatpush.msra.mxu0 %v892
        %901 = vmatpush.msra.mxu0 %v891
        %902 = vmatpush.msra.mxu0 %v890
        %903 = vmatpush.msra.mxu0 %v889
        %904 = vmatpush.msra.mxu0 %v888
        %905 = vmatpush.msra.mxu0 %v887
        %906 = vmatpush.msra.mxu0 %v886
        %907 = vmatpush.msra.mxu0 %v885
        %908 = vmatpush.msra.mxu0 %v884
        %909 = vmatpush.msra.mxu0 %v883
        %910 = vmatpush.msra.mxu0 %v882
        %911 = vmatpush.msra.mxu0 %v881
        %912 = vmatpush.msra.mxu0 %v880
        %913 = vmatpush.msra.mxu0 %v879
        %914 = vmatpush.msra.mxu0 %v878
        %915 = vmatmul.f32.gmra.mxu0 %v876
        %v916 = vpop.f32.mrf.mxu0
        %v917 = vadd.f32 %v897, %v916
        %918 = vdwg.mxu0
        %v919 = vadd.f32 %v917, %v833
        %v920 = vmax.f32 %v919, 0.0
        %s921 = scalar_lea.vmem [#allocation2], 640
        %v922 = vld [vmem:[%s921] sm:$0xff]
        %v923 = vld [vmem:[%s921 + $0x8] sm:$0xff]
        %v924 = vld [vmem:[%s921 + $0x10] sm:$0xff]
        %v925 = vld [vmem:[%s921 + $0x18] sm:$0xff]
        %v926 = vld [vmem:[%s921 + $0x20] sm:$0xff]
        %v927 = vld [vmem:[%s921 + $0x28] sm:$0xff]
        %v928 = vld [vmem:[%s921 + $0x30] sm:$0xff]
        %v929 = vld [vmem:[%s921 + $0x38] sm:$0xff]
        %v930 = vld [vmem:[%s921 + $0x40] sm:$0xff]
        %v931 = vld [vmem:[%s921 + $0x48] sm:$0xff]
        %v932 = vld [vmem:[%s921 + $0x50] sm:$0xff]
        %v933 = vld [vmem:[%s921 + $0x58] sm:$0xff]
        %v934 = vld [vmem:[%s921 + $0x60] sm:$0xff]
        %v935 = vld [vmem:[%s921 + $0x68] sm:$0xff]
        %v936 = vld [vmem:[%s921 + $0x70] sm:$0xff]
        %v937 = vld [vmem:[%s921 + $0x78] sm:$0xff]
        %s938 = scalar_lea.vmem %s4, 5
        %v939 = vld [vmem:[%s938] sm:$0x1]
        %v941 = vperm.slane %v939, 0
        %943 = vmatpush.msra.mxu0 %v937
        %944 = vmatpush.msra.mxu0 %v936
        %945 = vmatpush.msra.mxu0 %v935
        %946 = vmatpush.msra.mxu0 %v934
        %947 = vmatpush.msra.mxu0 %v933
        %948 = vmatpush.msra.mxu0 %v932
        %949 = vmatpush.msra.mxu0 %v931
        %950 = vmatpush.msra.mxu0 %v930
        %951 = vmatpush.msra.mxu0 %v929
        %952 = vmatpush.msra.mxu0 %v928
        %953 = vmatpush.msra.mxu0 %v927
        %954 = vmatpush.msra.mxu0 %v926
        %955 = vmatpush.msra.mxu0 %v925
        %956 = vmatpush.msra.mxu0 %v924
        %957 = vmatpush.msra.mxu0 %v923
        %958 = vmatpush.msra.mxu0 %v922
        %959 = vmatmul.f32.gmra.mxu0 %v920
        %v960 = vpop.f32.mrf.mxu0
        %v961 = vadd.f32 %v941, %v960
        %962 = vdwg.mxu0
        %v963 = vmax.f32 %v961, 0.0
        %s964 = scalar_lea.vmem [#allocation5], 640
        %v965 = vld [vmem:[%s964] sm:$0xff]
        %v966 = vld [vmem:[%s964 + $0x8] sm:$0xff]
        %v967 = vld [vmem:[%s964 + $0x10] sm:$0xff]
        %v968 = vld [vmem:[%s964 + $0x18] sm:$0xff]
        %v969 = vld [vmem:[%s964 + $0x20] sm:$0xff]
        %v970 = vld [vmem:[%s964 + $0x28] sm:$0xff]
        %v971 = vld [vmem:[%s964 + $0x30] sm:$0xff]
        %v972 = vld [vmem:[%s964 + $0x38] sm:$0xff]
        %v973 = vld [vmem:[%s964 + $0x40] sm:$0xff]
        %v974 = vld [vmem:[%s964 + $0x48] sm:$0xff]
        %v975 = vld [vmem:[%s964 + $0x50] sm:$0xff]
        %v976 = vld [vmem:[%s964 + $0x58] sm:$0xff]
        %v977 = vld [vmem:[%s964 + $0x60] sm:$0xff]
        %v978 = vld [vmem:[%s964 + $0x68] sm:$0xff]
        %v979 = vld [vmem:[%s964 + $0x70] sm:$0xff]
        %v980 = vld [vmem:[%s964 + $0x78] sm:$0xff]
        %s981 = scalar_lea.vmem %s6, 5
        %v982 = vld [vmem:[%s981] sm:$0x1]
        %v984 = vperm.slane %v982, 0
        %986 = vmatpush.msra.mxu0 %v980
        %987 = vmatpush.msra.mxu0 %v979
        %988 = vmatpush.msra.mxu0 %v978
        %989 = vmatpush.msra.mxu0 %v977
        %990 = vmatpush.msra.mxu0 %v976
        %991 = vmatpush.msra.mxu0 %v975
        %992 = vmatpush.msra.mxu0 %v974
        %993 = vmatpush.msra.mxu0 %v973
        %994 = vmatpush.msra.mxu0 %v972
        %995 = vmatpush.msra.mxu0 %v971
        %996 = vmatpush.msra.mxu0 %v970
        %997 = vmatpush.msra.mxu0 %v969
        %998 = vmatpush.msra.mxu0 %v968
        %999 = vmatpush.msra.mxu0 %v967
        %1000 = vmatpush.msra.mxu0 %v966
        %1001 = vmatpush.msra.mxu0 %v965
        %1002 = vmatmul.f32.gmra.mxu0 %v963
        %v1003 = vpop.f32.mrf.mxu0
        %v1004 = vadd.f32 %v984, %v1003
        %1005 = vdwg.mxu0
        %v1006 = vadd.f32 %v1004, %v920
        %v1007 = vmax.f32 %v1006, 0.0
        %s1008 = scalar_lea.vmem [#allocation2], 768
        %v1009 = vld [vmem:[%s1008] sm:$0xff]
        %v1010 = vld [vmem:[%s1008 + $0x8] sm:$0xff]
        %v1011 = vld [vmem:[%s1008 + $0x10] sm:$0xff]
        %v1012 = vld [vmem:[%s1008 + $0x18] sm:$0xff]
        %v1013 = vld [vmem:[%s1008 + $0x20] sm:$0xff]
        %v1014 = vld [vmem:[%s1008 + $0x28] sm:$0xff]
        %v1015 = vld [vmem:[%s1008 + $0x30] sm:$0xff]
        %v1016 = vld [vmem:[%s1008 + $0x38] sm:$0xff]
        %v1017 = vld [vmem:[%s1008 + $0x40] sm:$0xff]
        %v1018 = vld [vmem:[%s1008 + $0x48] sm:$0xff]
        %v1019 = vld [vmem:[%s1008 + $0x50] sm:$0xff]
        %v1020 = vld [vmem:[%s1008 + $0x58] sm:$0xff]
        %v1021 = vld [vmem:[%s1008 + $0x60] sm:$0xff]
        %v1022 = vld [vmem:[%s1008 + $0x68] sm:$0xff]
        %v1023 = vld [vmem:[%s1008 + $0x70] sm:$0xff]
        %v1024 = vld [vmem:[%s1008 + $0x78] sm:$0xff]
        %s1025 = scalar_lea.vmem %s4, 6
        %v1026 = vld [vmem:[%s1025] sm:$0x1]
        %v1028 = vperm.slane %v1026, 0
        %1030 = vmatpush.msra.mxu0 %v1024
        %1031 = vmatpush.msra.mxu0 %v1023
        %1032 = vmatpush.msra.mxu0 %v1022
        %1033 = vmatpush.msra.mxu0 %v1021
        %1034 = vmatpush.msra.mxu0 %v1020
        %1035 = vmatpush.msra.mxu0 %v1019
        %1036 = vmatpush.msra.mxu0 %v1018
        %1037 = vmatpush.msra.mxu0 %v1017
        %1038 = vmatpush.msra.mxu0 %v1016
        %1039 = vmatpush.msra.mxu0 %v1015
        %1040 = vmatpush.msra.mxu0 %v1014
        %1041 = vmatpush.msra.mxu0 %v1013
        %1042 = vmatpush.msra.mxu0 %v1012
        %1043 = vmatpush.msra.mxu0 %v1011
        %1044 = vmatpush.msra.mxu0 %v1010
        %1045 = vmatpush.msra.mxu0 %v1009
        %1046 = vmatmul.f32.gmra.mxu0 %v1007
        %v1047 = vpop.f32.mrf.mxu0
        %v1048 = vadd.f32 %v1028, %v1047
        %1049 = vdwg.mxu0
        %v1050 = vmax.f32 %v1048, 0.0
        %s1051 = scalar_lea.vmem [#allocation5], 768
        %v1052 = vld [vmem:[%s1051] sm:$0xff]
        %v1053 = vld [vmem:[%s1051 + $0x8] sm:$0xff]
        %v1054 = vld [vmem:[%s1051 + $0x10] sm:$0xff]
        %v1055 = vld [vmem:[%s1051 + $0x18] sm:$0xff]
        %v1056 = vld [vmem:[%s1051 + $0x20] sm:$0xff]
        %v1057 = vld [vmem:[%s1051 + $0x28] sm:$0xff]
        %v1058 = vld [vmem:[%s1051 + $0x30] sm:$0xff]
        %v1059 = vld [vmem:[%s1051 + $0x38] sm:$0xff]
        %v1060 = vld [vmem:[%s1051 + $0x40] sm:$0xff]
        %v1061 = vld [vmem:[%s1051 + $0x48] sm:$0xff]
        %v1062 = vld [vmem:[%s1051 + $0x50] sm:$0xff]
        %v1063 = vld [vmem:[%s1051 + $0x58] sm:$0xff]
        %v1064 = vld [vmem:[%s1051 + $0x60] sm:$0xff]
        %v1065 = vld [vmem:[%s1051 + $0x68] sm:$0xff]
        %v1066 = vld [vmem:[%s1051 + $0x70] sm:$0xff]
        %v1067 = vld [vmem:[%s1051 + $0x78] sm:$0xff]
        %s1068 = scalar_lea.vmem %s6, 6
        %v1069 = vld [vmem:[%s1068] sm:$0x1]
        %v1071 = vperm.slane %v1069, 0
        %1073 = vmatpush.msra.mxu0 %v1067
        %1074 = vmatpush.msra.mxu0 %v1066
        %1075 = vmatpush.msra.mxu0 %v1065
        %1076 = vmatpush.msra.mxu0 %v1064
        %1077 = vmatpush.msra.mxu0 %v1063
        %1078 = vmatpush.msra.mxu0 %v1062
        %1079 = vmatpush.msra.mxu0 %v1061
        %1080 = vmatpush.msra.mxu0 %v1060
        %1081 = vmatpush.msra.mxu0 %v1059
        %1082 = vmatpush.msra.mxu0 %v1058
        %1083 = vmatpush.msra.mxu0 %v1057
        %1084 = vmatpush.msra.mxu0 %v1056
        %1085 = vmatpush.msra.mxu0 %v1055
        %1086 = vmatpush.msra.mxu0 %v1054
        %1087 = vmatpush.msra.mxu0 %v1053
        %1088 = vmatpush.msra.mxu0 %v1052
        %1089 = vmatmul.f32.gmra.mxu0 %v1050
        %v1090 = vpop.f32.mrf.mxu0
        %v1091 = vadd.f32 %v1071, %v1090
        %1092 = vdwg.mxu0
        %v1093 = vadd.f32 %v1091, %v1007
        %v1094 = vmax.f32 %v1093, 0.0
        %1095 = vst [vmem:[%s376] sm:$0xff] %v1094
        %s1096 = sand.u32 %s227, 1
        %s1097 = scalar_lea.sflag [#allocation4], %s1096
        %s1098 = sand.u32 %s227, 1
        %s1099 = smul.addr %s1098, 8
        %s1100 = scalar_lea.vmem [#allocation8], %s1099
        // Predicated region
        $region69: #{tpu_custom_call.1} parent=55 // pred_check
          %p1101 = pneg %p237
        $region70: #{tpu_custom_call.1} parent=55 // pred_check_branch
          %1103 = sbr.rel (%p1101) target = $region72
        $region71: #{tpu_custom_call.1} parent=55 // pred_region
          %1105 = vsyncadd %s1097, 0
          %s1106 = smul.addr %s25, 8
          %s1107 = scalar_lea.hbm %s9, %s1106
          %s1109 = sshll.u32 %s1100, 4
          %s1110 = int_to_ptr.vmem [resolvable:$true] %s1109
          %s1111 = sshll.u32 %s1107, 4
          %s1112 = int_to_ptr.hbm [resolvable:$true] %s1111
          %1114 = dma.vmem_to_hbm [thread:$0]  %s1110, 128, %s1112, %s1097
        $region72: #{tpu_custom_call.1} parent=55 // pred_fallthru
          _
      $region56: #{tpu_custom_call.1} parent=5 // pred_fallthru
        _
      %p1115 = scmp.le.s32.totalorder 2, %s20
      // Predicated region
      $region73: #{tpu_custom_call.1} parent=5 // pred_check
        %p1116 = pneg %p1115
      $region74: #{tpu_custom_call.1} parent=5 // pred_check_branch
        %1118 = sbr.rel (%p1116) target = $region76
      $region75: #{tpu_custom_call.1} parent=5 // pred_region
        %s1119 = ssub.s32 %s20, 2
        // Predicated region
        $region77: #{tpu_custom_call.1} parent=75 // pred_check
          %p1120 = pneg %p243
        $region78: #{tpu_custom_call.1} parent=75 // pred_check_branch
          %1122 = sbr.rel (%p1120) target = $region80
        $region79: #{tpu_custom_call.1} parent=75 // pred_region
          %s1123 = sand.u32 %s228, 1
          %s1124 = scalar_lea.sflag [#allocation4], %s1123
          %s1125 = sand.u32 %s228, 1
          %s1126 = smul.addr %s1125, 8
          %s1127 = scalar_lea.vmem [#allocation8], %s1126
          %1129 = dma.done %s1124, 128
        $region80: #{tpu_custom_call.1} parent=75 // pred_fallthru
          _
      $region76: #{tpu_custom_call.1} parent=5 // pred_fallthru
        _
    $region6: #{tpu_custom_call.1} parent=1 // loop_footer
      %s24 = sadd.s32 1, %s20
    $region7: #{tpu_custom_call.1} parent=1 // loop_footer_branch
      %19 = sbr.rel target = $region3
    $region8: #{tpu_custom_call.1} parent=1 // loop_exit
      _
    %1130 = vsyncpa [#allocation3], 1
    %s1131 = scalar_lea.sflag [#allocation3], 1
    %1132 = vsyncpa %s1131, 1
    %1133 = vsyncpa [#allocation6], 1
    %1134 = vsyncpa [#allocation4], 1
    %s1135 = scalar_lea.sflag [#allocation4], 1
    %1136 = vsyncpa %s1135, 1

</llo_original>
